<compile_context>
chip_gen: v7x
topology: tpu7x:2x2x1
jax: 0.10.0
libtpu: 0.0.40
codegen_flags: <defaults>
</compile_context>

<pallas_src>
import jax
import jax.numpy as jnp
from jax.experimental import pallas as pl
from jax.experimental.pallas import tpu as pltpu


# --------------------------------- wrapper -----------------------------------
def multi_head_attention(x, wq, wk, wv, w_proj, b_proj, *, compute_dtype=None):
    """x: (B,T,C); wq/wk/wv: (n_heads, C, H); w_proj: (n_heads*H, C); b_proj: (C,)."""
    B, T, C = x.shape
    n_heads, _, H = wq.shape
    D = n_heads * H
    out_dtype = x.dtype
    mxu_dtype = compute_dtype if compute_dtype is not None else x.dtype

    # ---- weight preprocessing (hoist to parameter-init time in production) ----
    # Stack per-head weights column-wise: W[:, h*H:(h+1)*H] == w[h]  -> (C, D).
    # Fold the attention scale into the Q weights (weights are static).
    scale = jnp.asarray(H ** -0.5, jnp.float32)
    wq_cat = jnp.transpose(wq, (1, 0, 2)).reshape(C, D).astype(jnp.float32) * scale
    wk_cat = jnp.transpose(wk, (1, 0, 2)).reshape(C, D).astype(jnp.float32)
    wv_cat = jnp.transpose(wv, (1, 0, 2)).reshape(C, D).astype(jnp.float32)
    w_qkv = jnp.concatenate([wq_cat, wk_cat, wv_cat], axis=-1).astype(mxu_dtype)  # (C,3D)
    w_out = w_proj.astype(mxu_dtype)                                              # (D, C)
    b2d = b_proj.reshape(1, C).astype(jnp.float32)                                # (1, C)
    x_in = x.astype(mxu_dtype)

    # ---- batch-block size: raise matmul M-dim (Bb*T) toward one MXU tile ------
    target_m = 128
    Bb = max(1, min(B, target_m // T if T <= target_m else 1))
    while B % Bb != 0:
        Bb -= 1

    def kernel(x_ref, wqkv_ref, wproj_ref, b_ref, o_ref):
        # x_ref     : (Bb, T, C)  block of batch elements
        # wqkv_ref  : (C, 3D)     stacked Q|K|V weights (Q pre-scaled)
        # wproj_ref : (D, C)      output projection (transposed)
        # b_ref     : (1, C)      f32 bias
        # o_ref     : (Bb, T, C)
        xf = x_ref[...].reshape(Bb * T, C)

        # One MXU matmul produces Q, K, V for every head / every batch element.
        qkv = jnp.dot(xf, wqkv_ref[...],
                      preferred_element_type=jnp.float32)          # (Bb*T, 3D) f32

        # Causal mask shared by all heads; built from two thin iotas.
        row = jax.lax.broadcasted_iota(jnp.int32, (T, 1), 0)
        col = jax.lax.broadcasted_iota(jnp.int32, (1, T), 1)
        causal = row >= col                                         # (T, T) bool
        neg = jnp.float32(-1e30)   # finite: causal rows always keep the diagonal

        bias = b_ref[...]                                           # (1, C) f32

        for b in range(Bb):                      # static, small
            qkv_b = qkv[b * T:(b + 1) * T, :]                       # (T, 3D)
            y_acc = jnp.zeros((T, C), jnp.float32)

            for h in range(n_heads):             # static, small
                qh = qkv_b[:, h * H:(h + 1) * H]                    # (T, H)
                kh = qkv_b[:, D + h * H:D + (h + 1) * H]            # (T, H)
                vh = qkv_b[:, 2 * D + h * H:2 * D + (h + 1) * H]    # (T, H)

                # QK^T without materializing a transposed copy.
                s = jax.lax.dot_general(
                    qh, kh, (((1,), (1,)), ((), ())),
                    preferred_element_type=jnp.float32)             # (T, T) f32
                s = jnp.where(causal, s, neg)

                # Online-style softmax in f32 (max / exp / sum stay f32).
                m = jnp.max(s, axis=-1, keepdims=True)
                e = jnp.exp(s - m)
                den = jnp.sum(e, axis=-1, keepdims=True)

                # PV matmul on unnormalized probs; normalize the small (T,H)
                # result afterwards (EUP reciprocal, T/H x fewer VPU mults).
                pv = jnp.dot(e.astype(mxu_dtype), vh.astype(mxu_dtype),
                             preferred_element_type=jnp.float32)    # (T, H)
                oh = pv * pl.reciprocal(den, approx=False)          # (T, H)

                # Fold this head straight into the output projection.
                y_acc = y_acc + jnp.dot(
                    oh.astype(mxu_dtype), wproj_ref[h * H:(h + 1) * H, :],
                    preferred_element_type=jnp.float32)             # (T, C)

            o_ref[b] = (y_acc + bias).astype(o_ref.dtype)

    # ---- VMEM budget (double-buffered blocks + f32 intermediates, headroom) ---
    isz = jnp.dtype(mxu_dtype).itemsize
    osz = jnp.dtype(out_dtype).itemsize
    bytes_blocks = 2 * ((Bb * T * C) * isz + (C * 3 * D) * isz + (D * C) * isz
                        + C * 4 + (Bb * T * C) * osz)
    bytes_tmp = 4 * (Bb * T * 3 * D + 3 * T * T + T * C + 2 * T * H)
    vmem_limit = int(min(max(4 * (bytes_blocks + bytes_tmp), 8 << 20), 64 << 20))

    return pl.pallas_call(
        kernel,
        out_shape=jax.ShapeDtypeStruct((B, T, C), out_dtype),
        grid_spec=pltpu.PrefetchScalarGridSpec(
            num_scalar_prefetch=0,
            grid=(B // Bb,),
            in_specs=[
                pl.BlockSpec((Bb, T, C), lambda g: (g, 0, 0)),
                pl.BlockSpec((C, 3 * D), lambda g: (0, 0)),   # weights resident
                pl.BlockSpec((D, C), lambda g: (0, 0)),
                pl.BlockSpec((1, C), lambda g: (0, 0)),
            ],
            out_specs=pl.BlockSpec((Bb, T, C), lambda g: (g, 0, 0)),
        ),
        compiler_params=pltpu.CompilerParams(
            dimension_semantics=("parallel",),
            vmem_limit_bytes=vmem_limit),
    )(x_in, w_qkv, w_out, b2d)


# ------------------------------ pure-JAX reference ---------------------------
def _reference(x, wq, wk, wv, w_proj, b_proj):
    B, T, C = x.shape
    n_heads, _, H = wq.shape
    outs = []
    for h in range(n_heads):
        q = x @ wq[h]
        k = x @ wk[h]
        v = x @ wv[h]
        wei = (q @ jnp.swapaxes(k, -1, -2)) * (H ** -0.5)
        mask = jnp.tril(jnp.ones((T, T), dtype=bool))
        wei = jnp.where(mask, wei, -jnp.inf)
        wei = jax.nn.softmax(wei, axis=-1)
        outs.append(wei @ v)
    concat = jnp.concatenate(outs, axis=-1)
    return concat @ w_proj + b_proj


if __name__ == "__main__":
    # module hyperparams
    n_embd, headsize, blocksize, dropout, n_heads = 32, 8, 8, 0.0, 4
    B, T, C, H = 2, blocksize, n_embd, headsize
    D = n_heads * H

    key = jax.random.PRNGKey(0)
    k_x, k_q, k_k, k_v, k_w, k_b = jax.random.split(key, 6)

    x = jax.random.normal(k_x, (B, T, C), dtype=jnp.float32)

    # nn.Linear(n_embd, headsize, bias=False): weight (H, C); we store W^T -> (C, H)
    lim1 = 1.0 / (C ** 0.5)
    wq = jax.random.uniform(k_q, (n_heads, C, H), jnp.float32, -lim1, lim1)
    wk = jax.random.uniform(k_k, (n_heads, C, H), jnp.float32, -lim1, lim1)
    wv = jax.random.uniform(k_v, (n_heads, C, H), jnp.float32, -lim1, lim1)

    # nn.Linear(D, n_embd): weight (C, D) -> store transposed (D, C); bias (C,)
    lim2 = 1.0 / (D ** 0.5)
    w_proj = jax.random.uniform(k_w, (D, C), jnp.float32, -lim2, lim2)
    b_proj = jax.random.uniform(k_b, (C,), jnp.float32, -lim2, lim2)

    out = multi_head_attention(x, wq, wk, wv, w_proj, b_proj)
    out = jax.block_until_ready(out)

    ref = _reference(x, wq, wk, wv, w_proj, b_proj)
    assert out.shape == (B, T, C)
    assert jnp.allclose(out, ref, atol=1e-5, rtol=1e-5), "mismatch vs reference"

    print("KERNEL_OK")
</pallas_src>

<mosaic_0001>
module attributes {stable_mosaic.version = 11 : i64} {
  func.func @kernel(%arg0: i32, %arg1: memref<2x8x32xf32, #tpu.memory_space<vmem>>, %arg2: memref<32x96xf32, #tpu.memory_space<vmem>>, %arg3: memref<32x32xf32, #tpu.memory_space<vmem>>, %arg4: memref<1x32xf32, #tpu.memory_space<vmem>>, %arg5: memref<2x8x32xf32, #tpu.memory_space<vmem>>) attributes {dimension_semantics = [#tpu.dimension_semantics<parallel>], iteration_bounds = array<i64: 1>, scalar_prefetch = 0 : i64, scratch_operands = 0 : i64, tpu.core_type = #tpu.core_type<tc>, window_params = [{transform_indices = @transform_0, window_bounds = array<i64: 2, 8, 32>}, {pipeline_mode = #tpu.pipeline_mode<synchronous>, transform_indices = @transform_1, window_bounds = array<i64: 32, 96>}, {pipeline_mode = #tpu.pipeline_mode<synchronous>, transform_indices = @transform_2, window_bounds = array<i64: 32, 32>}, {pipeline_mode = #tpu.pipeline_mode<synchronous>, transform_indices = @transform_3, window_bounds = array<i64: 1, 32>}, {transform_indices = @transform_4, window_bounds = array<i64: 2, 8, 32>}]} {
    %c0 = arith.constant 0 : index
    %c0_0 = arith.constant 0 : index
    %c0_1 = arith.constant 0 : index
    %0 = vector.load %arg1[%c0, %c0_0, %c0_1] : memref<2x8x32xf32, #tpu.memory_space<vmem>>, vector<2x8x32xf32>
    %1 = vector.shape_cast %0 : vector<2x8x32xf32> to vector<16x32xf32>
    %c0_2 = arith.constant 0 : index
    %c0_3 = arith.constant 0 : index
    %2 = vector.load %arg2[%c0_2, %c0_3] : memref<32x96xf32, #tpu.memory_space<vmem>>, vector<32x96xf32>
    %cst = arith.constant dense<0.000000e+00> : vector<16x96xf32>
    %3 = tpu.matmul %1, %2, %cst {dimension_numbers = #tpu.dot_dimension_numbers<[1], [0], [0], [1], [0, 0, 1, 1], [], []>} : vector<16x32xf32>, vector<32x96xf32>, vector<16x96xf32> -> vector<16x96xf32>
    %4 = tpu.iota {dimensions = array<i32: 0>} : vector<8x1xi32>
    %5 = tpu.iota {dimensions = array<i32: 1>} : vector<1x8xi32>
    %6 = vector.broadcast %4 : vector<8x1xi32> to vector<8x8xi32>
    %7 = vector.broadcast %5 : vector<1x8xi32> to vector<8x8xi32>
    %8 = arith.cmpi sge, %6, %7 : vector<8x8xi32>
    %c0_4 = arith.constant 0 : index
    %c0_5 = arith.constant 0 : index
    %9 = vector.load %arg4[%c0_4, %c0_5] : memref<1x32xf32, #tpu.memory_space<vmem>>, vector<1x32xf32>
    %10 = vector.extract_strided_slice %3 {offsets = [0, 0], sizes = [8, 96], strides = [1, 1]} : vector<16x96xf32> to vector<8x96xf32>
    %cst_6 = arith.constant 0.000000e+00 : f32
    %11 = vector.broadcast %cst_6 : f32 to vector<8x32xf32>
    %12 = vector.extract_strided_slice %10 {offsets = [0, 0], sizes = [8, 8], strides = [1, 1]} : vector<8x96xf32> to vector<8x8xf32>
    %13 = vector.extract_strided_slice %10 {offsets = [0, 32], sizes = [8, 8], strides = [1, 1]} : vector<8x96xf32> to vector<8x8xf32>
    %14 = vector.extract_strided_slice %10 {offsets = [0, 64], sizes = [8, 8], strides = [1, 1]} : vector<8x96xf32> to vector<8x8xf32>
    %cst_7 = arith.constant dense<0.000000e+00> : vector<8x8xf32>
    %15 = tpu.matmul %12, %13, %cst_7 {dimension_numbers = #tpu.dot_dimension_numbers<[1], [1], [0], [0], [0, 0, 1, 0], [], []>} : vector<8x8xf32>, vector<8x8xf32>, vector<8x8xf32> -> vector<8x8xf32>
    %cst_8 = arith.constant -1.000000e+30 : f32
    %16 = vector.broadcast %cst_8 : f32 to vector<8x8xf32>
    %17 = arith.select %8, %15, %16 : vector<8x8xi1>, vector<8x8xf32>
    %cst_9 = arith.constant dense<0xFF800000> : vector<8xf32>
    %18 = vector.multi_reduction <maximumf>, %17, %cst_9 [1] : vector<8x8xf32> to vector<8xf32>
    %19 = vector.shape_cast %18 : vector<8xf32> to vector<8x1xf32>
    %20 = vector.broadcast %19 : vector<8x1xf32> to vector<8x8xf32>
    %21 = arith.subf %17, %20 : vector<8x8xf32>
    %22 = math.exp %21 : vector<8x8xf32>
    %cst_10 = arith.constant dense<0.000000e+00> : vector<8xf32>
    %23 = vector.multi_reduction <add>, %22, %cst_10 [1] : vector<8x8xf32> to vector<8xf32>
    %24 = vector.shape_cast %23 : vector<8xf32> to vector<8x1xf32>
    %cst_11 = arith.constant dense<0.000000e+00> : vector<8x8xf32>
    %25 = tpu.matmul %22, %14, %cst_11 {dimension_numbers = #tpu.dot_dimension_numbers<[1], [0], [0], [1], [0, 0, 1, 1], [], []>} : vector<8x8xf32>, vector<8x8xf32>, vector<8x8xf32> -> vector<8x8xf32>
    %26 = tpu.reciprocal %24 : vector<8x1xf32> -> vector<8x1xf32>
    %27 = vector.broadcast %26 : vector<8x1xf32> to vector<8x8xf32>
    %28 = arith.mulf %25, %27 : vector<8x8xf32>
    %c0_12 = arith.constant 0 : index
    %c0_13 = arith.constant 0 : index
    %29 = vector.load %arg3[%c0_12, %c0_13] : memref<32x32xf32, #tpu.memory_space<vmem>>, vector<8x32xf32>
    %cst_14 = arith.constant dense<0.000000e+00> : vector<8x32xf32>
    %30 = tpu.matmul %28, %29, %cst_14 {dimension_numbers = #tpu.dot_dimension_numbers<[1], [0], [0], [1], [0, 0, 1, 1], [], []>} : vector<8x8xf32>, vector<8x32xf32>, vector<8x32xf32> -> vector<8x32xf32>
    %31 = arith.addf %11, %30 : vector<8x32xf32>
    %32 = vector.extract_strided_slice %10 {offsets = [0, 8], sizes = [8, 8], strides = [1, 1]} : vector<8x96xf32> to vector<8x8xf32>
    %33 = vector.extract_strided_slice %10 {offsets = [0, 40], sizes = [8, 8], strides = [1, 1]} : vector<8x96xf32> to vector<8x8xf32>
    %34 = vector.extract_strided_slice %10 {offsets = [0, 72], sizes = [8, 8], strides = [1, 1]} : vector<8x96xf32> to vector<8x8xf32>
    %cst_15 = arith.constant dense<0.000000e+00> : vector<8x8xf32>
    %35 = tpu.matmul %32, %33, %cst_15 {dimension_numbers = #tpu.dot_dimension_numbers<[1], [1], [0], [0], [0, 0, 1, 0], [], []>} : vector<8x8xf32>, vector<8x8xf32>, vector<8x8xf32> -> vector<8x8xf32>
    %cst_16 = arith.constant -1.000000e+30 : f32
    %36 = vector.broadcast %cst_16 : f32 to vector<8x8xf32>
    %37 = arith.select %8, %35, %36 : vector<8x8xi1>, vector<8x8xf32>
    %cst_17 = arith.constant dense<0xFF800000> : vector<8xf32>
    %38 = vector.multi_reduction <maximumf>, %37, %cst_17 [1] : vector<8x8xf32> to vector<8xf32>
    %39 = vector.shape_cast %38 : vector<8xf32> to vector<8x1xf32>
    %40 = vector.broadcast %39 : vector<8x1xf32> to vector<8x8xf32>
    %41 = arith.subf %37, %40 : vector<8x8xf32>
    %42 = math.exp %41 : vector<8x8xf32>
    %cst_18 = arith.constant dense<0.000000e+00> : vector<8xf32>
    %43 = vector.multi_reduction <add>, %42, %cst_18 [1] : vector<8x8xf32> to vector<8xf32>
    %44 = vector.shape_cast %43 : vector<8xf32> to vector<8x1xf32>
    %cst_19 = arith.constant dense<0.000000e+00> : vector<8x8xf32>
    %45 = tpu.matmul %42, %34, %cst_19 {dimension_numbers = #tpu.dot_dimension_numbers<[1], [0], [0], [1], [0, 0, 1, 1], [], []>} : vector<8x8xf32>, vector<8x8xf32>, vector<8x8xf32> -> vector<8x8xf32>
    %46 = tpu.reciprocal %44 : vector<8x1xf32> -> vector<8x1xf32>
    %47 = vector.broadcast %46 : vector<8x1xf32> to vector<8x8xf32>
    %48 = arith.mulf %45, %47 : vector<8x8xf32>
    %c8 = arith.constant 8 : index
    %c0_20 = arith.constant 0 : index
    %49 = vector.load %arg3[%c8, %c0_20] : memref<32x32xf32, #tpu.memory_space<vmem>>, vector<8x32xf32>
    %cst_21 = arith.constant dense<0.000000e+00> : vector<8x32xf32>
    %50 = tpu.matmul %48, %49, %cst_21 {dimension_numbers = #tpu.dot_dimension_numbers<[1], [0], [0], [1], [0, 0, 1, 1], [], []>} : vector<8x8xf32>, vector<8x32xf32>, vector<8x32xf32> -> vector<8x32xf32>
    %51 = arith.addf %31, %50 : vector<8x32xf32>
    %52 = vector.extract_strided_slice %10 {offsets = [0, 16], sizes = [8, 8], strides = [1, 1]} : vector<8x96xf32> to vector<8x8xf32>
    %53 = vector.extract_strided_slice %10 {offsets = [0, 48], sizes = [8, 8], strides = [1, 1]} : vector<8x96xf32> to vector<8x8xf32>
    %54 = vector.extract_strided_slice %10 {offsets = [0, 80], sizes = [8, 8], strides = [1, 1]} : vector<8x96xf32> to vector<8x8xf32>
    %cst_22 = arith.constant dense<0.000000e+00> : vector<8x8xf32>
    %55 = tpu.matmul %52, %53, %cst_22 {dimension_numbers = #tpu.dot_dimension_numbers<[1], [1], [0], [0], [0, 0, 1, 0], [], []>} : vector<8x8xf32>, vector<8x8xf32>, vector<8x8xf32> -> vector<8x8xf32>
    %cst_23 = arith.constant -1.000000e+30 : f32
    %56 = vector.broadcast %cst_23 : f32 to vector<8x8xf32>
    %57 = arith.select %8, %55, %56 : vector<8x8xi1>, vector<8x8xf32>
    %cst_24 = arith.constant dense<0xFF800000> : vector<8xf32>
    %58 = vector.multi_reduction <maximumf>, %57, %cst_24 [1] : vector<8x8xf32> to vector<8xf32>
    %59 = vector.shape_cast %58 : vector<8xf32> to vector<8x1xf32>
    %60 = vector.broadcast %59 : vector<8x1xf32> to vector<8x8xf32>
    %61 = arith.subf %57, %60 : vector<8x8xf32>
    %62 = math.exp %61 : vector<8x8xf32>
    %cst_25 = arith.constant dense<0.000000e+00> : vector<8xf32>
    %63 = vector.multi_reduction <add>, %62, %cst_25 [1] : vector<8x8xf32> to vector<8xf32>
    %64 = vector.shape_cast %63 : vector<8xf32> to vector<8x1xf32>
    %cst_26 = arith.constant dense<0.000000e+00> : vector<8x8xf32>
    %65 = tpu.matmul %62, %54, %cst_26 {dimension_numbers = #tpu.dot_dimension_numbers<[1], [0], [0], [1], [0, 0, 1, 1], [], []>} : vector<8x8xf32>, vector<8x8xf32>, vector<8x8xf32> -> vector<8x8xf32>
    %66 = tpu.reciprocal %64 : vector<8x1xf32> -> vector<8x1xf32>
    %67 = vector.broadcast %66 : vector<8x1xf32> to vector<8x8xf32>
    %68 = arith.mulf %65, %67 : vector<8x8xf32>
    %c16 = arith.constant 16 : index
    %c0_27 = arith.constant 0 : index
    %69 = vector.load %arg3[%c16, %c0_27] : memref<32x32xf32, #tpu.memory_space<vmem>>, vector<8x32xf32>
    %cst_28 = arith.constant dense<0.000000e+00> : vector<8x32xf32>
    %70 = tpu.matmul %68, %69, %cst_28 {dimension_numbers = #tpu.dot_dimension_numbers<[1], [0], [0], [1], [0, 0, 1, 1], [], []>} : vector<8x8xf32>, vector<8x32xf32>, vector<8x32xf32> -> vector<8x32xf32>
    %71 = arith.addf %51, %70 : vector<8x32xf32>
    %72 = vector.extract_strided_slice %10 {offsets = [0, 24], sizes = [8, 8], strides = [1, 1]} : vector<8x96xf32> to vector<8x8xf32>
    %73 = vector.extract_strided_slice %10 {offsets = [0, 56], sizes = [8, 8], strides = [1, 1]} : vector<8x96xf32> to vector<8x8xf32>
    %74 = vector.extract_strided_slice %10 {offsets = [0, 88], sizes = [8, 8], strides = [1, 1]} : vector<8x96xf32> to vector<8x8xf32>
    %cst_29 = arith.constant dense<0.000000e+00> : vector<8x8xf32>
    %75 = tpu.matmul %72, %73, %cst_29 {dimension_numbers = #tpu.dot_dimension_numbers<[1], [1], [0], [0], [0, 0, 1, 0], [], []>} : vector<8x8xf32>, vector<8x8xf32>, vector<8x8xf32> -> vector<8x8xf32>
    %cst_30 = arith.constant -1.000000e+30 : f32
    %76 = vector.broadcast %cst_30 : f32 to vector<8x8xf32>
    %77 = arith.select %8, %75, %76 : vector<8x8xi1>, vector<8x8xf32>
    %cst_31 = arith.constant dense<0xFF800000> : vector<8xf32>
    %78 = vector.multi_reduction <maximumf>, %77, %cst_31 [1] : vector<8x8xf32> to vector<8xf32>
    %79 = vector.shape_cast %78 : vector<8xf32> to vector<8x1xf32>
    %80 = vector.broadcast %79 : vector<8x1xf32> to vector<8x8xf32>
    %81 = arith.subf %77, %80 : vector<8x8xf32>
    %82 = math.exp %81 : vector<8x8xf32>
    %cst_32 = arith.constant dense<0.000000e+00> : vector<8xf32>
    %83 = vector.multi_reduction <add>, %82, %cst_32 [1] : vector<8x8xf32> to vector<8xf32>
    %84 = vector.shape_cast %83 : vector<8xf32> to vector<8x1xf32>
    %cst_33 = arith.constant dense<0.000000e+00> : vector<8x8xf32>
    %85 = tpu.matmul %82, %74, %cst_33 {dimension_numbers = #tpu.dot_dimension_numbers<[1], [0], [0], [1], [0, 0, 1, 1], [], []>} : vector<8x8xf32>, vector<8x8xf32>, vector<8x8xf32> -> vector<8x8xf32>
    %86 = tpu.reciprocal %84 : vector<8x1xf32> -> vector<8x1xf32>
    %87 = vector.broadcast %86 : vector<8x1xf32> to vector<8x8xf32>
    %88 = arith.mulf %85, %87 : vector<8x8xf32>
    %c24 = arith.constant 24 : index
    %c0_34 = arith.constant 0 : index
    %89 = vector.load %arg3[%c24, %c0_34] : memref<32x32xf32, #tpu.memory_space<vmem>>, vector<8x32xf32>
    %cst_35 = arith.constant dense<0.000000e+00> : vector<8x32xf32>
    %90 = tpu.matmul %88, %89, %cst_35 {dimension_numbers = #tpu.dot_dimension_numbers<[1], [0], [0], [1], [0, 0, 1, 1], [], []>} : vector<8x8xf32>, vector<8x32xf32>, vector<8x32xf32> -> vector<8x32xf32>
    %91 = arith.addf %71, %90 : vector<8x32xf32>
    %92 = vector.broadcast %9 : vector<1x32xf32> to vector<8x32xf32>
    %93 = arith.addf %91, %92 : vector<8x32xf32>
    %c0_36 = arith.constant 0 : index
    %c0_37 = arith.constant 0 : index
    %c0_38 = arith.constant 0 : index
    %94 = vector.load %arg5[%c0_36, %c0_37, %c0_38] : memref<2x8x32xf32, #tpu.memory_space<vmem>>, vector<1x8x32xf32>
    %95 = vector.shape_cast %94 : vector<1x8x32xf32> to vector<8x32xf32>
    %96 = vector.shape_cast %93 : vector<8x32xf32> to vector<1x8x32xf32>
    tpu.vector_store %arg5[%c0_36, %c0_37, %c0_38], %96 {strides = array<i32>} : memref<2x8x32xf32, #tpu.memory_space<vmem>>, vector<1x8x32xf32>,
    %97 = vector.extract_strided_slice %3 {offsets = [8, 0], sizes = [8, 96], strides = [1, 1]} : vector<16x96xf32> to vector<8x96xf32>
    %cst_39 = arith.constant 0.000000e+00 : f32
    %98 = vector.broadcast %cst_39 : f32 to vector<8x32xf32>
    %99 = vector.extract_strided_slice %97 {offsets = [0, 0], sizes = [8, 8], strides = [1, 1]} : vector<8x96xf32> to vector<8x8xf32>
    %100 = vector.extract_strided_slice %97 {offsets = [0, 32], sizes = [8, 8], strides = [1, 1]} : vector<8x96xf32> to vector<8x8xf32>
    %101 = vector.extract_strided_slice %97 {offsets = [0, 64], sizes = [8, 8], strides = [1, 1]} : vector<8x96xf32> to vector<8x8xf32>
    %cst_40 = arith.constant dense<0.000000e+00> : vector<8x8xf32>
    %102 = tpu.matmul %99, %100, %cst_40 {dimension_numbers = #tpu.dot_dimension_numbers<[1], [1], [0], [0], [0, 0, 1, 0], [], []>} : vector<8x8xf32>, vector<8x8xf32>, vector<8x8xf32> -> vector<8x8xf32>
    %cst_41 = arith.constant -1.000000e+30 : f32
    %103 = vector.broadcast %cst_41 : f32 to vector<8x8xf32>
    %104 = arith.select %8, %102, %103 : vector<8x8xi1>, vector<8x8xf32>
    %cst_42 = arith.constant dense<0xFF800000> : vector<8xf32>
    %105 = vector.multi_reduction <maximumf>, %104, %cst_42 [1] : vector<8x8xf32> to vector<8xf32>
    %106 = vector.shape_cast %105 : vector<8xf32> to vector<8x1xf32>
    %107 = vector.broadcast %106 : vector<8x1xf32> to vector<8x8xf32>
    %108 = arith.subf %104, %107 : vector<8x8xf32>
    %109 = math.exp %108 : vector<8x8xf32>
    %cst_43 = arith.constant dense<0.000000e+00> : vector<8xf32>
    %110 = vector.multi_reduction <add>, %109, %cst_43 [1] : vector<8x8xf32> to vector<8xf32>
    %111 = vector.shape_cast %110 : vector<8xf32> to vector<8x1xf32>
    %cst_44 = arith.constant dense<0.000000e+00> : vector<8x8xf32>
    %112 = tpu.matmul %109, %101, %cst_44 {dimension_numbers = #tpu.dot_dimension_numbers<[1], [0], [0], [1], [0, 0, 1, 1], [], []>} : vector<8x8xf32>, vector<8x8xf32>, vector<8x8xf32> -> vector<8x8xf32>
    %113 = tpu.reciprocal %111 : vector<8x1xf32> -> vector<8x1xf32>
    %114 = vector.broadcast %113 : vector<8x1xf32> to vector<8x8xf32>
    %115 = arith.mulf %112, %114 : vector<8x8xf32>
    %c0_45 = arith.constant 0 : index
    %c0_46 = arith.constant 0 : index
    %116 = vector.load %arg3[%c0_45, %c0_46] : memref<32x32xf32, #tpu.memory_space<vmem>>, vector<8x32xf32>
    %cst_47 = arith.constant dense<0.000000e+00> : vector<8x32xf32>
    %117 = tpu.matmul %115, %116, %cst_47 {dimension_numbers = #tpu.dot_dimension_numbers<[1], [0], [0], [1], [0, 0, 1, 1], [], []>} : vector<8x8xf32>, vector<8x32xf32>, vector<8x32xf32> -> vector<8x32xf32>
    %118 = arith.addf %98, %117 : vector<8x32xf32>
    %119 = vector.extract_strided_slice %97 {offsets = [0, 8], sizes = [8, 8], strides = [1, 1]} : vector<8x96xf32> to vector<8x8xf32>
    %120 = vector.extract_strided_slice %97 {offsets = [0, 40], sizes = [8, 8], strides = [1, 1]} : vector<8x96xf32> to vector<8x8xf32>
    %121 = vector.extract_strided_slice %97 {offsets = [0, 72], sizes = [8, 8], strides = [1, 1]} : vector<8x96xf32> to vector<8x8xf32>
    %cst_48 = arith.constant dense<0.000000e+00> : vector<8x8xf32>
    %122 = tpu.matmul %119, %120, %cst_48 {dimension_numbers = #tpu.dot_dimension_numbers<[1], [1], [0], [0], [0, 0, 1, 0], [], []>} : vector<8x8xf32>, vector<8x8xf32>, vector<8x8xf32> -> vector<8x8xf32>
    %cst_49 = arith.constant -1.000000e+30 : f32
    %123 = vector.broadcast %cst_49 : f32 to vector<8x8xf32>
    %124 = arith.select %8, %122, %123 : vector<8x8xi1>, vector<8x8xf32>
    %cst_50 = arith.constant dense<0xFF800000> : vector<8xf32>
    %125 = vector.multi_reduction <maximumf>, %124, %cst_50 [1] : vector<8x8xf32> to vector<8xf32>
    %126 = vector.shape_cast %125 : vector<8xf32> to vector<8x1xf32>
    %127 = vector.broadcast %126 : vector<8x1xf32> to vector<8x8xf32>
    %128 = arith.subf %124, %127 : vector<8x8xf32>
    %129 = math.exp %128 : vector<8x8xf32>
    %cst_51 = arith.constant dense<0.000000e+00> : vector<8xf32>
    %130 = vector.multi_reduction <add>, %129, %cst_51 [1] : vector<8x8xf32> to vector<8xf32>
    %131 = vector.shape_cast %130 : vector<8xf32> to vector<8x1xf32>
    %cst_52 = arith.constant dense<0.000000e+00> : vector<8x8xf32>
    %132 = tpu.matmul %129, %121, %cst_52 {dimension_numbers = #tpu.dot_dimension_numbers<[1], [0], [0], [1], [0, 0, 1, 1], [], []>} : vector<8x8xf32>, vector<8x8xf32>, vector<8x8xf32> -> vector<8x8xf32>
    %133 = tpu.reciprocal %131 : vector<8x1xf32> -> vector<8x1xf32>
    %134 = vector.broadcast %133 : vector<8x1xf32> to vector<8x8xf32>
    %135 = arith.mulf %132, %134 : vector<8x8xf32>
    %c8_53 = arith.constant 8 : index
    %c0_54 = arith.constant 0 : index
    %136 = vector.load %arg3[%c8_53, %c0_54] : memref<32x32xf32, #tpu.memory_space<vmem>>, vector<8x32xf32>
    %cst_55 = arith.constant dense<0.000000e+00> : vector<8x32xf32>
    %137 = tpu.matmul %135, %136, %cst_55 {dimension_numbers = #tpu.dot_dimension_numbers<[1], [0], [0], [1], [0, 0, 1, 1], [], []>} : vector<8x8xf32>, vector<8x32xf32>, vector<8x32xf32> -> vector<8x32xf32>
    %138 = arith.addf %118, %137 : vector<8x32xf32>
    %139 = vector.extract_strided_slice %97 {offsets = [0, 16], sizes = [8, 8], strides = [1, 1]} : vector<8x96xf32> to vector<8x8xf32>
    %140 = vector.extract_strided_slice %97 {offsets = [0, 48], sizes = [8, 8], strides = [1, 1]} : vector<8x96xf32> to vector<8x8xf32>
    %141 = vector.extract_strided_slice %97 {offsets = [0, 80], sizes = [8, 8], strides = [1, 1]} : vector<8x96xf32> to vector<8x8xf32>
    %cst_56 = arith.constant dense<0.000000e+00> : vector<8x8xf32>
    %142 = tpu.matmul %139, %140, %cst_56 {dimension_numbers = #tpu.dot_dimension_numbers<[1], [1], [0], [0], [0, 0, 1, 0], [], []>} : vector<8x8xf32>, vector<8x8xf32>, vector<8x8xf32> -> vector<8x8xf32>
    %cst_57 = arith.constant -1.000000e+30 : f32
    %143 = vector.broadcast %cst_57 : f32 to vector<8x8xf32>
    %144 = arith.select %8, %142, %143 : vector<8x8xi1>, vector<8x8xf32>
    %cst_58 = arith.constant dense<0xFF800000> : vector<8xf32>
    %145 = vector.multi_reduction <maximumf>, %144, %cst_58 [1] : vector<8x8xf32> to vector<8xf32>
    %146 = vector.shape_cast %145 : vector<8xf32> to vector<8x1xf32>
    %147 = vector.broadcast %146 : vector<8x1xf32> to vector<8x8xf32>
    %148 = arith.subf %144, %147 : vector<8x8xf32>
    %149 = math.exp %148 : vector<8x8xf32>
    %cst_59 = arith.constant dense<0.000000e+00> : vector<8xf32>
    %150 = vector.multi_reduction <add>, %149, %cst_59 [1] : vector<8x8xf32> to vector<8xf32>
    %151 = vector.shape_cast %150 : vector<8xf32> to vector<8x1xf32>
    %cst_60 = arith.constant dense<0.000000e+00> : vector<8x8xf32>
    %152 = tpu.matmul %149, %141, %cst_60 {dimension_numbers = #tpu.dot_dimension_numbers<[1], [0], [0], [1], [0, 0, 1, 1], [], []>} : vector<8x8xf32>, vector<8x8xf32>, vector<8x8xf32> -> vector<8x8xf32>
    %153 = tpu.reciprocal %151 : vector<8x1xf32> -> vector<8x1xf32>
    %154 = vector.broadcast %153 : vector<8x1xf32> to vector<8x8xf32>
    %155 = arith.mulf %152, %154 : vector<8x8xf32>
    %c16_61 = arith.constant 16 : index
    %c0_62 = arith.constant 0 : index
    %156 = vector.load %arg3[%c16_61, %c0_62] : memref<32x32xf32, #tpu.memory_space<vmem>>, vector<8x32xf32>
    %cst_63 = arith.constant dense<0.000000e+00> : vector<8x32xf32>
    %157 = tpu.matmul %155, %156, %cst_63 {dimension_numbers = #tpu.dot_dimension_numbers<[1], [0], [0], [1], [0, 0, 1, 1], [], []>} : vector<8x8xf32>, vector<8x32xf32>, vector<8x32xf32> -> vector<8x32xf32>
    %158 = arith.addf %138, %157 : vector<8x32xf32>
    %159 = vector.extract_strided_slice %97 {offsets = [0, 24], sizes = [8, 8], strides = [1, 1]} : vector<8x96xf32> to vector<8x8xf32>
    %160 = vector.extract_strided_slice %97 {offsets = [0, 56], sizes = [8, 8], strides = [1, 1]} : vector<8x96xf32> to vector<8x8xf32>
    %161 = vector.extract_strided_slice %97 {offsets = [0, 88], sizes = [8, 8], strides = [1, 1]} : vector<8x96xf32> to vector<8x8xf32>
    %cst_64 = arith.constant dense<0.000000e+00> : vector<8x8xf32>
    %162 = tpu.matmul %159, %160, %cst_64 {dimension_numbers = #tpu.dot_dimension_numbers<[1], [1], [0], [0], [0, 0, 1, 0], [], []>} : vector<8x8xf32>, vector<8x8xf32>, vector<8x8xf32> -> vector<8x8xf32>
    %cst_65 = arith.constant -1.000000e+30 : f32
    %163 = vector.broadcast %cst_65 : f32 to vector<8x8xf32>
    %164 = arith.select %8, %162, %163 : vector<8x8xi1>, vector<8x8xf32>
    %cst_66 = arith.constant dense<0xFF800000> : vector<8xf32>
    %165 = vector.multi_reduction <maximumf>, %164, %cst_66 [1] : vector<8x8xf32> to vector<8xf32>
    %166 = vector.shape_cast %165 : vector<8xf32> to vector<8x1xf32>
    %167 = vector.broadcast %166 : vector<8x1xf32> to vector<8x8xf32>
    %168 = arith.subf %164, %167 : vector<8x8xf32>
    %169 = math.exp %168 : vector<8x8xf32>
    %cst_67 = arith.constant dense<0.000000e+00> : vector<8xf32>
    %170 = vector.multi_reduction <add>, %169, %cst_67 [1] : vector<8x8xf32> to vector<8xf32>
    %171 = vector.shape_cast %170 : vector<8xf32> to vector<8x1xf32>
    %cst_68 = arith.constant dense<0.000000e+00> : vector<8x8xf32>
    %172 = tpu.matmul %169, %161, %cst_68 {dimension_numbers = #tpu.dot_dimension_numbers<[1], [0], [0], [1], [0, 0, 1, 1], [], []>} : vector<8x8xf32>, vector<8x8xf32>, vector<8x8xf32> -> vector<8x8xf32>
    %173 = tpu.reciprocal %171 : vector<8x1xf32> -> vector<8x1xf32>
    %174 = vector.broadcast %173 : vector<8x1xf32> to vector<8x8xf32>
    %175 = arith.mulf %172, %174 : vector<8x8xf32>
    %c24_69 = arith.constant 24 : index
    %c0_70 = arith.constant 0 : index
    %176 = vector.load %arg3[%c24_69, %c0_70] : memref<32x32xf32, #tpu.memory_space<vmem>>, vector<8x32xf32>
    %cst_71 = arith.constant dense<0.000000e+00> : vector<8x32xf32>
    %177 = tpu.matmul %175, %176, %cst_71 {dimension_numbers = #tpu.dot_dimension_numbers<[1], [0], [0], [1], [0, 0, 1, 1], [], []>} : vector<8x8xf32>, vector<8x32xf32>, vector<8x32xf32> -> vector<8x32xf32>
    %178 = arith.addf %158, %177 : vector<8x32xf32>
    %179 = vector.broadcast %9 : vector<1x32xf32> to vector<8x32xf32>
    %180 = arith.addf %178, %179 : vector<8x32xf32>
    %c1 = arith.constant 1 : index
    %c0_72 = arith.constant 0 : index
    %c0_73 = arith.constant 0 : index
    %181 = vector.load %arg5[%c1, %c0_72, %c0_73] : memref<2x8x32xf32, #tpu.memory_space<vmem>>, vector<1x8x32xf32>
    %182 = vector.shape_cast %181 : vector<1x8x32xf32> to vector<8x32xf32>
    %183 = vector.shape_cast %180 : vector<8x32xf32> to vector<1x8x32xf32>
    tpu.vector_store %arg5[%c1, %c0_72, %c0_73], %183 {strides = array<i32>} : memref<2x8x32xf32, #tpu.memory_space<vmem>>, vector<1x8x32xf32>,
    return
  }
  func.func @transform_0(%arg0: i32) -> (i32, i32, i32) {
    %c0_i32 = arith.constant 0 : i32
    %c0_i32_0 = arith.constant 0 : i32
    %c0_i32_1 = arith.constant 0 : i32
    return %arg0, %c0_i32, %c0_i32_0 : i32, i32, i32
  }
  func.func @transform_1(%arg0: i32) -> (i32, i32) {
    %c0_i32 = arith.constant 0 : i32
    %c0_i32_0 = arith.constant 0 : i32
    %c0_i32_1 = arith.constant 0 : i32
    return %c0_i32, %c0_i32_0 : i32, i32
  }
  func.func @transform_2(%arg0: i32) -> (i32, i32) {
    %c0_i32 = arith.constant 0 : i32
    %c0_i32_0 = arith.constant 0 : i32
    %c0_i32_1 = arith.constant 0 : i32
    return %c0_i32, %c0_i32_0 : i32, i32
  }
  func.func @transform_3(%arg0: i32) -> (i32, i32) {
    %c0_i32 = arith.constant 0 : i32
    %c0_i32_0 = arith.constant 0 : i32
    %c0_i32_1 = arith.constant 0 : i32
    return %c0_i32, %c0_i32_0 : i32, i32
  }
  func.func @transform_4(%arg0: i32) -> (i32, i32, i32) {
    %c0_i32 = arith.constant 0 : i32
    %c0_i32_0 = arith.constant 0 : i32
    %c0_i32_1 = arith.constant 0 : i32
    return %arg0, %c0_i32, %c0_i32_0 : i32, i32, i32
  }
}

</mosaic_0001>

<llo_original>
// kernel: tpu_custom_call.1
$region0: #{tpu_custom_call.1}
  #allocation0 [shape = 'u32[]', space=smem, size = 0x4, offset = 0x4, fixed_abs, tag = 'smem constant byte address 0x4 - core index']
  #allocation1 [shape = 'u32[144,128]{1,0:T(1,128)}', space=vmem, size = 0x12000, scoped, tag = 'internal scratch']
  %s0 = inlined_call_operand.hbm [shape: f32[2,8,32], index: 0, kind: input, shape index: {}]
  %s1 = inlined_call_operand.hbm [shape: f32[32,96], index: 1, kind: input, shape index: {}]
  %s2 = inlined_call_operand.hbm [shape: f32[32,32], index: 2, kind: input, shape index: {}]
  %s3 = inlined_call_operand.vmem [shape: f32[1,32], index: 3, kind: input, shape index: {}]
  %s4 = inlined_call_operand.hbm [shape: f32[2,8,32], index: 4, kind: output, shape index: {}]
  %s5 = sld [smem:[#allocation0]]
  $region38: #{tpu_custom_call.1} parent=0
    _
  %s7 = ssub.s32 1, %s5
  %s8 = scalar_select 0, %s7, %s5
  $region1: #{tpu_custom_call.1} parent=0
    #allocation2 [shape = 'u8[8192]{0}', space=vmem, size = 0x2000, scoped, tag = 'input window, operand 0, single buffered']
    #allocation3 [shape = 's32[1]{0}', space=sflag, size = 0x4, scoped, tag = 'scoped memory for tpu_custom_call.1']
    #allocation4 [shape = 's32[1]{0}', space=sflag, size = 0x4, scoped, tag = 'scoped memory for tpu_custom_call.1']
    #allocation5 [shape = 'u8[16384]{0}', space=vmem, size = 0x4000, scoped, tag = 'input window, operand 1, single buffered']
    #allocation6 [shape = 's32[1]{0}', space=sflag, size = 0x4, scoped, tag = 'scoped memory for tpu_custom_call.1']
    #allocation7 [shape = 'u8[16384]{0}', space=vmem, size = 0x4000, scoped, tag = 'input window, operand 2, single buffered']
    #allocation8 [shape = 'u8[8192]{0}', space=vmem, size = 0x2000, scoped, tag = 'output window, operand 0, single buffered']
    %9 = vsyncpa [#allocation3], 0
    %10 = vsyncpa [#allocation6], 0
    %11 = vsyncpa [#allocation4], 0
    // Predicated region
    $region2: #{tpu_custom_call.1} parent=1 // pred_check
      _
    $region3: #{tpu_custom_call.1} parent=1 // pred_check_branch
      %13 = sbr.rel (0) target = $region5
    $region4: #{tpu_custom_call.1} parent=1 // pred_region
      %s15 = ssub.s32 256, 256
      %16 = vsyncadd [#allocation3], %s15
      %s17 = sshll.u32 [#allocation2], 4
      %s18 = int_to_ptr.vmem [resolvable:$true] %s17
      %23 = dma.hbm_to_vmem [thread:$0]  %s0, 256, %s18, [#allocation3], 128, 128, 8
    $region5: #{tpu_custom_call.1} parent=1 // pred_fallthru
      _
    // Predicated region
    $region6: #{tpu_custom_call.1} parent=1 // pred_check
      _
    $region7: #{tpu_custom_call.1} parent=1 // pred_check_branch
      %25 = sbr.rel (0) target = $region9
    $region8: #{tpu_custom_call.1} parent=1 // pred_region
      %s27 = ssub.s32 512, 512
      %28 = vsyncadd [#allocation6], %s27
      %s29 = sshll.u32 [#allocation5], 4
      %s30 = int_to_ptr.vmem [resolvable:$true] %s29
      %35 = dma.hbm_to_vmem [thread:$0]  %s1, 512, %s30, [#allocation6], 128, 128, 8
    $region9: #{tpu_custom_call.1} parent=1 // pred_fallthru
      _
    // Predicated region
    $region10: #{tpu_custom_call.1} parent=1 // pred_check
      _
    $region11: #{tpu_custom_call.1} parent=1 // pred_check_branch
      %37 = sbr.rel (0) target = $region13
    $region12: #{tpu_custom_call.1} parent=1 // pred_region
      %s39 = ssub.s32 512, 512
      %40 = vsyncadd [#allocation6], %s39
      %s41 = sshll.u32 [#allocation7], 4
      %s42 = int_to_ptr.vmem [resolvable:$true] %s41
      %47 = dma.hbm_to_vmem [thread:$0]  %s2, 512, %s42, [#allocation6], 128, 128, 8
    $region13: #{tpu_custom_call.1} parent=1 // pred_fallthru
      _
    // Predicated region
    $region14: #{tpu_custom_call.1} parent=1 // pred_check
      _
    $region15: #{tpu_custom_call.1} parent=1 // pred_check_branch
      %49 = sbr.rel (0) target = $region17
    $region16: #{tpu_custom_call.1} parent=1 // pred_region
      _
    $region17: #{tpu_custom_call.1} parent=1 // pred_fallthru
      _
    // Predicated region
    $region18: #{tpu_custom_call.1} parent=1 // pred_check
      _
    $region19: #{tpu_custom_call.1} parent=1 // pred_check_branch
      %51 = sbr.rel (0) target = $region21
    $region20: #{tpu_custom_call.1} parent=1 // pred_region
      %52 = dma.done [#allocation3], 256
    $region21: #{tpu_custom_call.1} parent=1 // pred_fallthru
      _
    // Predicated region
    $region22: #{tpu_custom_call.1} parent=1 // pred_check
      _
    $region23: #{tpu_custom_call.1} parent=1 // pred_check_branch
      %54 = sbr.rel (0) target = $region25
    $region24: #{tpu_custom_call.1} parent=1 // pred_region
      %55 = dma.done [#allocation6], 512
    $region25: #{tpu_custom_call.1} parent=1 // pred_fallthru
      _
    // Predicated region
    $region26: #{tpu_custom_call.1} parent=1 // pred_check
      _
    $region27: #{tpu_custom_call.1} parent=1 // pred_check_branch
      %57 = sbr.rel (0) target = $region29
    $region28: #{tpu_custom_call.1} parent=1 // pred_region
      %58 = dma.done [#allocation6], 512
    $region29: #{tpu_custom_call.1} parent=1 // pred_fallthru
      _
    %v59 = vld [vmem:[#allocation2] sm:$0xff]
    %v60 = vld [vmem:[#allocation2 + $0x8] sm:$0xff]
    %v61 = vld [vmem:[#allocation5] sm:$0xff]
    %v62 = vld [vmem:[#allocation5 + $0x8] sm:$0xff]
    %v63 = vld [vmem:[#allocation5 + $0x10] sm:$0xff]
    %v64 = vld [vmem:[#allocation5 + $0x18] sm:$0xff]
    %vm65 = vcmask 261120
    %v67 = vsel %vm65, %v59, 0
    %v70 = vsel %vm65, %v60, 0
    %72 = vmatprep.subr.mxu0 0.0
    %73 = vmatpush1.msra.mxu0 %v61
    %74 = vmatprep.subr.mxu0 0.0
    %75 = vmatpush1.msra.mxu0 %v62
    %76 = vmatprep.subr.mxu0 0.0
    %77 = vmatpush1.msra.mxu0 %v63
    %78 = vmatprep.subr.mxu0 0.0
    %79 = vmatpush1.msra.mxu0 %v64
    %80 = vmatprep.subr.mxu0 0.0
    %81 = vmatpush1.msra.mxu0 0.0
    %82 = vmatprep.subr.mxu0 0.0
    %83 = vmatpush1.msra.mxu0 0.0
    %84 = vmatprep.subr.mxu0 0.0
    %85 = vmatpush1.msra.mxu0 0.0
    %86 = vmatprep.subr.mxu0 0.0
    %87 = vmatpush1.msra.mxu0 0.0
    %88 = vmatprep.subr.mxu0 0.0
    %89 = vmatpush1.msra.mxu0 0.0
    %90 = vmatprep.subr.mxu0 0.0
    %91 = vmatpush1.msra.mxu0 0.0
    %92 = vmatprep.subr.mxu0 0.0
    %93 = vmatpush1.msra.mxu0 0.0
    %94 = vmatprep.subr.mxu0 0.0
    %95 = vmatpush1.msra.mxu0 0.0
    %96 = vmatprep.subr.mxu0 0.0
    %97 = vmatpush1.msra.mxu0 0.0
    %98 = vmatprep.subr.mxu0 0.0
    %99 = vmatpush1.msra.mxu0 0.0
    %100 = vmatprep.subr.mxu0 0.0
    %101 = vmatpush1.msra.mxu0 0.0
    %102 = vmatprep.subr.mxu0 0.0
    %103 = vmatpush1.msra.mxu0 0.0
    %104 = vmatprep.subr.mxu0 0.0
    %105 = vmatpush1.msra.mxu0 0.0
    %106 = vmatprep.subr.mxu0 0.0
    %107 = vmatpush1.msra.mxu0 0.0
    %108 = vmatprep.subr.mxu0 0.0
    %109 = vmatpush1.msra.mxu0 0.0
    %110 = vmatprep.subr.mxu0 0.0
    %111 = vmatpush1.msra.mxu0 0.0
    %112 = vmatprep.subr.mxu0 0.0
    %113 = vmatpush1.msra.mxu0 0.0
    %114 = vmatprep.subr.mxu0 0.0
    %115 = vmatpush1.msra.mxu0 0.0
    %116 = vmatprep.subr.mxu0 0.0
    %117 = vmatpush1.msra.mxu0 0.0
    %118 = vmatprep.subr.mxu0 0.0
    %119 = vmatpush1.msra.mxu0 0.0
    %120 = vmatprep.subr.mxu0 0.0
    %121 = vmatpush1.msra.mxu0 0.0
    %122 = vmatprep.subr.mxu0 0.0
    %123 = vmatpush1.msra.mxu0 0.0
    %124 = vmatprep.subr.mxu0 0.0
    %125 = vmatpush1.msra.mxu0 0.0
    %126 = vmatprep.subr.mxu0 0.0
    %127 = vmatpush1.msra.mxu0 0.0
    %128 = vmatprep.subr.mxu0 0.0
    %129 = vmatpush1.msra.mxu0 0.0
    %130 = vmatprep.subr.mxu0 0.0
    %131 = vmatpush1.msra.mxu0 0.0
    %132 = vmatprep.subr.mxu0 0.0
    %133 = vmatpush1.msra.mxu0 0.0
    %134 = vmatprep.subr.mxu0 0.0
    %135 = vmatpush1.msra.mxu0 0.0
    %136 = vmatprep.mubr.f32.mxu0 0.0
    %137 = vmatmul.mubr.f32.gmra.mrb[0].mxu0 %v67
    %v138 = vpop.f32.mrb[0].mxu0
    %v139 = vadd.f32 0.0, %v138
    %v140 = vpop.f32.mrb[0].mxu0
    %141 = vmatprep.mubr.f32.mxu0 0.0
    %142 = vmatmul.mubr.f32.gmra.mrb[0].mxu0 %v70
    %v143 = vpop.f32.mrb[0].mxu0
    %v144 = vadd.f32 0.0, %v143
    %v145 = vpop.f32.mrb[0].mxu0
    %146 = vdwg.mxu0
    %v147 = vlaneseq
    %v148 = vshrl.u32 %v147, 7
    %v149 = vlaneseq
    %v150 = vand.u32 %v149, 127
    %vm151 = vcmp.ge.s32.totalorder %v148, %v150
    %v152 = vld [vmem:[%s3] sm:$0x1]
    %154 = vrot.lane.b32.xlu0 %v139, 96
    %v155 = vpop.permute.xlu0 %154
    %vm156 = vcmask 64512
    %v157 = vsel %vm156, %v139, 0
    %v159 = vsel %vm156, %v155, 0
    %161 = vmatprep.subr.mxu0 0.0
    %162 = vmatpush1.xpose.msra.mxu0 %v159
    %163 = vmatprep.subr.mxu0 0.0
    %164 = vmatpush1.xpose.msra.mxu0 0.0
    %165 = vmatprep.subr.mxu0 0.0
    %166 = vmatpush1.xpose.msra.mxu0 0.0
    %167 = vmatprep.subr.mxu0 0.0
    %168 = vmatpush1.xpose.msra.mxu0 0.0
    %169 = vmatprep.subr.mxu0 0.0
    %170 = vmatpush1.xpose.msra.mxu0 0.0
    %171 = vmatprep.subr.mxu0 0.0
    %172 = vmatpush1.xpose.msra.mxu0 0.0
    %173 = vmatprep.subr.mxu0 0.0
    %174 = vmatpush1.xpose.msra.mxu0 0.0
    %175 = vmatprep.subr.mxu0 0.0
    %176 = vmatpush1.xpose.msra.mxu0 0.0
    %177 = vmatprep.subr.mxu0 0.0
    %178 = vmatpush1.xpose.msra.mxu0 0.0
    %179 = vmatprep.subr.mxu0 0.0
    %180 = vmatpush1.xpose.msra.mxu0 0.0
    %181 = vmatprep.subr.mxu0 0.0
    %182 = vmatpush1.xpose.msra.mxu0 0.0
    %183 = vmatprep.subr.mxu0 0.0
    %184 = vmatpush1.xpose.msra.mxu0 0.0
    %185 = vmatprep.subr.mxu0 0.0
    %186 = vmatpush1.xpose.msra.mxu0 0.0
    %187 = vmatprep.subr.mxu0 0.0
    %188 = vmatpush1.xpose.msra.mxu0 0.0
    %189 = vmatprep.subr.mxu0 0.0
    %190 = vmatpush1.xpose.msra.mxu0 0.0
    %191 = vmatprep.subr.mxu0 0.0
    %192 = vmatpush1.xpose.msra.mxu0 0.0
    %193 = vmatprep.subr.mxu0 0.0
    %194 = vmatpush1.xpose.msra.mxu0 0.0
    %195 = vmatprep.subr.mxu0 0.0
    %196 = vmatpush1.xpose.msra.mxu0 0.0
    %197 = vmatprep.subr.mxu0 0.0
    %198 = vmatpush1.xpose.msra.mxu0 0.0
    %199 = vmatprep.subr.mxu0 0.0
    %200 = vmatpush1.xpose.msra.mxu0 0.0
    %201 = vmatprep.subr.mxu0 0.0
    %202 = vmatpush1.xpose.msra.mxu0 0.0
    %203 = vmatprep.subr.mxu0 0.0
    %204 = vmatpush1.xpose.msra.mxu0 0.0
    %205 = vmatprep.subr.mxu0 0.0
    %206 = vmatpush1.xpose.msra.mxu0 0.0
    %207 = vmatprep.subr.mxu0 0.0
    %208 = vmatpush1.xpose.msra.mxu0 0.0
    %209 = vmatprep.subr.mxu0 0.0
    %210 = vmatpush1.xpose.msra.mxu0 0.0
    %211 = vmatprep.subr.mxu0 0.0
    %212 = vmatpush1.xpose.msra.mxu0 0.0
    %213 = vmatprep.subr.mxu0 0.0
    %214 = vmatpush1.xpose.msra.mxu0 0.0
    %215 = vmatprep.subr.mxu0 0.0
    %216 = vmatpush1.xpose.msra.mxu0 0.0
    %217 = vmatprep.subr.mxu0 0.0
    %218 = vmatpush1.xpose.msra.mxu0 0.0
    %219 = vmatprep.subr.mxu0 0.0
    %220 = vmatpush1.xpose.msra.mxu0 0.0
    %221 = vmatprep.subr.mxu0 0.0
    %222 = vmatpush1.xpose.msra.mxu0 0.0
    %223 = vmatprep.subr.mxu0 0.0
    %224 = vmatpush1.xpose.msra.mxu0 0.0
    %225 = vmatprep.mubr.f32.mxu0 0.0
    %226 = vmatmul.mubr.f32.gmra.mrb[0].mxu0 %v157
    %v227 = vpop.f32.mrb[0].mxu0
    %v228 = vadd.f32 0.0, %v227
    %v229 = vpop.f32.mrb[0].mxu0
    %230 = vdwg.mxu0
    %v231 = vsel %vm151, %v228, -1e+30
    %v232 = vsel %vm156, %v231, -inf
    %233 = vmax.xlane.f32.xlu0 %v232
    %v234 = vpop.xlane.xlu0 %233
    %v235 = vsub.f32 %v231, %v234
    %v236 = vmul.f32 %v235, 1.442695
    %v237 = vpow.pop %v236
    %v238 = vsel %vm156, %v237, 0.0
    %239 = vadd.xlane.f32.xlu0 %v238
    %v240 = vpop.xlane.xlu0 %239
    %241 = vrot.lane.b32.xlu0 %v139, 64
    %v242 = vpop.permute.xlu0 %241
    %v245 = vsel %vm156, %v237, 0
    %247 = vmatprep.subr.mxu0 0.0
    %248 = vmatpush1.msra.mxu0 %v242
    %249 = vmatprep.subr.mxu0 0.0
    %250 = vmatpush1.msra.mxu0 0.0
    %251 = vmatprep.subr.mxu0 0.0
    %252 = vmatpush1.msra.mxu0 0.0
    %253 = vmatprep.subr.mxu0 0.0
    %254 = vmatpush1.msra.mxu0 0.0
    %255 = vmatprep.subr.mxu0 0.0
    %256 = vmatpush1.msra.mxu0 0.0
    %257 = vmatprep.subr.mxu0 0.0
    %258 = vmatpush1.msra.mxu0 0.0
    %259 = vmatprep.subr.mxu0 0.0
    %260 = vmatpush1.msra.mxu0 0.0
    %261 = vmatprep.subr.mxu0 0.0
    %262 = vmatpush1.msra.mxu0 0.0
    %263 = vmatprep.subr.mxu0 0.0
    %264 = vmatpush1.msra.mxu0 0.0
    %265 = vmatprep.subr.mxu0 0.0
    %266 = vmatpush1.msra.mxu0 0.0
    %267 = vmatprep.subr.mxu0 0.0
    %268 = vmatpush1.msra.mxu0 0.0
    %269 = vmatprep.subr.mxu0 0.0
    %270 = vmatpush1.msra.mxu0 0.0
    %271 = vmatprep.subr.mxu0 0.0
    %272 = vmatpush1.msra.mxu0 0.0
    %273 = vmatprep.subr.mxu0 0.0
    %274 = vmatpush1.msra.mxu0 0.0
    %275 = vmatprep.subr.mxu0 0.0
    %276 = vmatpush1.msra.mxu0 0.0
    %277 = vmatprep.subr.mxu0 0.0
    %278 = vmatpush1.msra.mxu0 0.0
    %279 = vmatprep.subr.mxu0 0.0
    %280 = vmatpush1.msra.mxu0 0.0
    %281 = vmatprep.subr.mxu0 0.0
    %282 = vmatpush1.msra.mxu0 0.0
    %283 = vmatprep.subr.mxu0 0.0
    %284 = vmatpush1.msra.mxu0 0.0
    %285 = vmatprep.subr.mxu0 0.0
    %286 = vmatpush1.msra.mxu0 0.0
    %287 = vmatprep.subr.mxu0 0.0
    %288 = vmatpush1.msra.mxu0 0.0
    %289 = vmatprep.subr.mxu0 0.0
    %290 = vmatpush1.msra.mxu0 0.0
    %291 = vmatprep.subr.mxu0 0.0
    %292 = vmatpush1.msra.mxu0 0.0
    %293 = vmatprep.subr.mxu0 0.0
    %294 = vmatpush1.msra.mxu0 0.0
    %295 = vmatprep.subr.mxu0 0.0
    %296 = vmatpush1.msra.mxu0 0.0
    %297 = vmatprep.subr.mxu0 0.0
    %298 = vmatpush1.msra.mxu0 0.0
    %299 = vmatprep.subr.mxu0 0.0
    %300 = vmatpush1.msra.mxu0 0.0
    %301 = vmatprep.subr.mxu0 0.0
    %302 = vmatpush1.msra.mxu0 0.0
    %303 = vmatprep.subr.mxu0 0.0
    %304 = vmatpush1.msra.mxu0 0.0
    %305 = vmatprep.subr.mxu0 0.0
    %306 = vmatpush1.msra.mxu0 0.0
    %307 = vmatprep.subr.mxu0 0.0
    %308 = vmatpush1.msra.mxu0 0.0
    %309 = vmatprep.subr.mxu0 0.0
    %310 = vmatpush1.msra.mxu0 0.0
    %311 = vmatprep.mubr.f32.mxu0 0.0
    %312 = vmatmul.mubr.f32.gmra.mrb[0].mxu0 %v245
    %v313 = vpop.f32.mrb[0].mxu0
    %v314 = vadd.f32 0.0, %v313
    %v315 = vpop.f32.mrb[0].mxu0
    %316 = vdwg.mxu0
    %v317 = vrcp.pop %v240
    %v318 = vmul.f32 %v314, %v317
    %v319 = vld [vmem:[#allocation7] sm:$0xff]
    %320 = vrot.lane.b32.xlu0 %v139, 120
    %v321 = vpop.permute.xlu0 %320
    %322 = vrot.lane.b32.xlu0 %v139, 88
    %v323 = vpop.permute.xlu0 %322
    %v324 = vsel %vm156, %v321, 0
    %v326 = vsel %vm156, %v323, 0
    %328 = vmatprep.subr.mxu0 0.0
    %329 = vmatpush1.xpose.msra.mxu0 %v326
    %330 = vmatprep.subr.mxu0 0.0
    %331 = vmatpush1.xpose.msra.mxu0 0.0
    %332 = vmatprep.subr.mxu0 0.0
    %333 = vmatpush1.xpose.msra.mxu0 0.0
    %334 = vmatprep.subr.mxu0 0.0
    %335 = vmatpush1.xpose.msra.mxu0 0.0
    %336 = vmatprep.subr.mxu0 0.0
    %337 = vmatpush1.xpose.msra.mxu0 0.0
    %338 = vmatprep.subr.mxu0 0.0
    %339 = vmatpush1.xpose.msra.mxu0 0.0
    %340 = vmatprep.subr.mxu0 0.0
    %341 = vmatpush1.xpose.msra.mxu0 0.0
    %342 = vmatprep.subr.mxu0 0.0
    %343 = vmatpush1.xpose.msra.mxu0 0.0
    %344 = vmatprep.subr.mxu0 0.0
    %345 = vmatpush1.xpose.msra.mxu0 0.0
    %346 = vmatprep.subr.mxu0 0.0
    %347 = vmatpush1.xpose.msra.mxu0 0.0
    %348 = vmatprep.subr.mxu0 0.0
    %349 = vmatpush1.xpose.msra.mxu0 0.0
    %350 = vmatprep.subr.mxu0 0.0
    %351 = vmatpush1.xpose.msra.mxu0 0.0
    %352 = vmatprep.subr.mxu0 0.0
    %353 = vmatpush1.xpose.msra.mxu0 0.0
    %354 = vmatprep.subr.mxu0 0.0
    %355 = vmatpush1.xpose.msra.mxu0 0.0
    %356 = vmatprep.subr.mxu0 0.0
    %357 = vmatpush1.xpose.msra.mxu0 0.0
    %358 = vmatprep.subr.mxu0 0.0
    %359 = vmatpush1.xpose.msra.mxu0 0.0
    %360 = vmatprep.subr.mxu0 0.0
    %361 = vmatpush1.xpose.msra.mxu0 0.0
    %362 = vmatprep.subr.mxu0 0.0
    %363 = vmatpush1.xpose.msra.mxu0 0.0
    %364 = vmatprep.subr.mxu0 0.0
    %365 = vmatpush1.xpose.msra.mxu0 0.0
    %366 = vmatprep.subr.mxu0 0.0
    %367 = vmatpush1.xpose.msra.mxu0 0.0
    %368 = vmatprep.subr.mxu0 0.0
    %369 = vmatpush1.xpose.msra.mxu0 0.0
    %370 = vmatprep.subr.mxu0 0.0
    %371 = vmatpush1.xpose.msra.mxu0 0.0
    %372 = vmatprep.subr.mxu0 0.0
    %373 = vmatpush1.xpose.msra.mxu0 0.0
    %374 = vmatprep.subr.mxu0 0.0
    %375 = vmatpush1.xpose.msra.mxu0 0.0
    %376 = vmatprep.subr.mxu0 0.0
    %377 = vmatpush1.xpose.msra.mxu0 0.0
    %378 = vmatprep.subr.mxu0 0.0
    %379 = vmatpush1.xpose.msra.mxu0 0.0
    %380 = vmatprep.subr.mxu0 0.0
    %381 = vmatpush1.xpose.msra.mxu0 0.0
    %382 = vmatprep.subr.mxu0 0.0
    %383 = vmatpush1.xpose.msra.mxu0 0.0
    %384 = vmatprep.subr.mxu0 0.0
    %385 = vmatpush1.xpose.msra.mxu0 0.0
    %386 = vmatprep.subr.mxu0 0.0
    %387 = vmatpush1.xpose.msra.mxu0 0.0
    %388 = vmatprep.subr.mxu0 0.0
    %389 = vmatpush1.xpose.msra.mxu0 0.0
    %390 = vmatprep.subr.mxu0 0.0
    %391 = vmatpush1.xpose.msra.mxu0 0.0
    %392 = vmatprep.mubr.f32.mxu0 0.0
    %393 = vmatmul.mubr.f32.gmra.mrb[0].mxu0 %v324
    %v394 = vpop.f32.mrb[0].mxu0
    %v395 = vadd.f32 0.0, %v394
    %v396 = vpop.f32.mrb[0].mxu0
    %397 = vdwg.mxu0
    %v398 = vsel %vm151, %v395, -1e+30
    %v399 = vsel %vm156, %v398, -inf
    %400 = vmax.xlane.f32.xlu0 %v399
    %v401 = vpop.xlane.xlu0 %400
    %v402 = vsub.f32 %v398, %v401
    %v403 = vmul.f32 %v402, 1.442695
    %v404 = vpow.pop %v403
    %v405 = vsel %vm156, %v404, 0.0
    %406 = vadd.xlane.f32.xlu0 %v405
    %v407 = vpop.xlane.xlu0 %406
    %408 = vrot.lane.b32.xlu0 %v139, 56
    %v409 = vpop.permute.xlu0 %408
    %v412 = vsel %vm156, %v404, 0
    %414 = vmatprep.subr.mxu0 0.0
    %415 = vmatpush1.msra.mxu0 %v409
    %416 = vmatprep.subr.mxu0 0.0
    %417 = vmatpush1.msra.mxu0 0.0
    %418 = vmatprep.subr.mxu0 0.0
    %419 = vmatpush1.msra.mxu0 0.0
    %420 = vmatprep.subr.mxu0 0.0
    %421 = vmatpush1.msra.mxu0 0.0
    %422 = vmatprep.subr.mxu0 0.0
    %423 = vmatpush1.msra.mxu0 0.0
    %424 = vmatprep.subr.mxu0 0.0
    %425 = vmatpush1.msra.mxu0 0.0
    %426 = vmatprep.subr.mxu0 0.0
    %427 = vmatpush1.msra.mxu0 0.0
    %428 = vmatprep.subr.mxu0 0.0
    %429 = vmatpush1.msra.mxu0 0.0
    %430 = vmatprep.subr.mxu0 0.0
    %431 = vmatpush1.msra.mxu0 0.0
    %432 = vmatprep.subr.mxu0 0.0
    %433 = vmatpush1.msra.mxu0 0.0
    %434 = vmatprep.subr.mxu0 0.0
    %435 = vmatpush1.msra.mxu0 0.0
    %436 = vmatprep.subr.mxu0 0.0
    %437 = vmatpush1.msra.mxu0 0.0
    %438 = vmatprep.subr.mxu0 0.0
    %439 = vmatpush1.msra.mxu0 0.0
    %440 = vmatprep.subr.mxu0 0.0
    %441 = vmatpush1.msra.mxu0 0.0
    %442 = vmatprep.subr.mxu0 0.0
    %443 = vmatpush1.msra.mxu0 0.0
    %444 = vmatprep.subr.mxu0 0.0
    %445 = vmatpush1.msra.mxu0 0.0
    %446 = vmatprep.subr.mxu0 0.0
    %447 = vmatpush1.msra.mxu0 0.0
    %448 = vmatprep.subr.mxu0 0.0
    %449 = vmatpush1.msra.mxu0 0.0
    %450 = vmatprep.subr.mxu0 0.0
    %451 = vmatpush1.msra.mxu0 0.0
    %452 = vmatprep.subr.mxu0 0.0
    %453 = vmatpush1.msra.mxu0 0.0
    %454 = vmatprep.subr.mxu0 0.0
    %455 = vmatpush1.msra.mxu0 0.0
    %456 = vmatprep.subr.mxu0 0.0
    %457 = vmatpush1.msra.mxu0 0.0
    %458 = vmatprep.subr.mxu0 0.0
    %459 = vmatpush1.msra.mxu0 0.0
    %460 = vmatprep.subr.mxu0 0.0
    %461 = vmatpush1.msra.mxu0 0.0
    %462 = vmatprep.subr.mxu0 0.0
    %463 = vmatpush1.msra.mxu0 0.0
    %464 = vmatprep.subr.mxu0 0.0
    %465 = vmatpush1.msra.mxu0 0.0
    %466 = vmatprep.subr.mxu0 0.0
    %467 = vmatpush1.msra.mxu0 0.0
    %468 = vmatprep.subr.mxu0 0.0
    %469 = vmatpush1.msra.mxu0 0.0
    %470 = vmatprep.subr.mxu0 0.0
    %471 = vmatpush1.msra.mxu0 0.0
    %472 = vmatprep.subr.mxu0 0.0
    %473 = vmatpush1.msra.mxu0 0.0
    %474 = vmatprep.subr.mxu0 0.0
    %475 = vmatpush1.msra.mxu0 0.0
    %476 = vmatprep.subr.mxu0 0.0
    %477 = vmatpush1.msra.mxu0 0.0
    %478 = vmatprep.mubr.f32.mxu0 0.0
    %479 = vmatmul.mubr.f32.gmra.mrb[0].mxu0 %v412
    %v480 = vpop.f32.mrb[0].mxu0
    %v481 = vadd.f32 0.0, %v480
    %v482 = vpop.f32.mrb[0].mxu0
    %483 = vdwg.mxu0
    %v484 = vrcp.pop %v407
    %v485 = vmul.f32 %v481, %v484
    %v486 = vld [vmem:[#allocation7 + $0x8] sm:$0xff]
    %v488 = vsel %vm156, %v485, 0
    %490 = vmatprep.subr.mxu0 0.0
    %491 = vmatpush1.msra.mxu0 %v486
    %492 = vmatprep.subr.mxu0 0.0
    %493 = vmatpush1.msra.mxu0 0.0
    %494 = vmatprep.subr.mxu0 0.0
    %495 = vmatpush1.msra.mxu0 0.0
    %496 = vmatprep.subr.mxu0 0.0
    %497 = vmatpush1.msra.mxu0 0.0
    %498 = vmatprep.subr.mxu0 0.0
    %499 = vmatpush1.msra.mxu0 0.0
    %500 = vmatprep.subr.mxu0 0.0
    %501 = vmatpush1.msra.mxu0 0.0
    %502 = vmatprep.subr.mxu0 0.0
    %503 = vmatpush1.msra.mxu0 0.0
    %504 = vmatprep.subr.mxu0 0.0
    %505 = vmatpush1.msra.mxu0 0.0
    %506 = vmatprep.subr.mxu0 0.0
    %507 = vmatpush1.msra.mxu0 0.0
    %508 = vmatprep.subr.mxu0 0.0
    %509 = vmatpush1.msra.mxu0 0.0
    %510 = vmatprep.subr.mxu0 0.0
    %511 = vmatpush1.msra.mxu0 0.0
    %512 = vmatprep.subr.mxu0 0.0
    %513 = vmatpush1.msra.mxu0 0.0
    %514 = vmatprep.subr.mxu0 0.0
    %515 = vmatpush1.msra.mxu0 0.0
    %516 = vmatprep.subr.mxu0 0.0
    %517 = vmatpush1.msra.mxu0 0.0
    %518 = vmatprep.subr.mxu0 0.0
    %519 = vmatpush1.msra.mxu0 0.0
    %520 = vmatprep.subr.mxu0 0.0
    %521 = vmatpush1.msra.mxu0 0.0
    %522 = vmatprep.subr.mxu0 0.0
    %523 = vmatpush1.msra.mxu0 0.0
    %524 = vmatprep.subr.mxu0 0.0
    %525 = vmatpush1.msra.mxu0 0.0
    %526 = vmatprep.subr.mxu0 0.0
    %527 = vmatpush1.msra.mxu0 0.0
    %528 = vmatprep.subr.mxu0 0.0
    %529 = vmatpush1.msra.mxu0 0.0
    %530 = vmatprep.subr.mxu0 0.0
    %531 = vmatpush1.msra.mxu0 0.0
    %532 = vmatprep.subr.mxu0 0.0
    %533 = vmatpush1.msra.mxu0 0.0
    %534 = vmatprep.subr.mxu0 0.0
    %535 = vmatpush1.msra.mxu0 0.0
    %536 = vmatprep.subr.mxu0 0.0
    %537 = vmatpush1.msra.mxu0 0.0
    %538 = vmatprep.subr.mxu0 0.0
    %539 = vmatpush1.msra.mxu0 0.0
    %540 = vmatprep.subr.mxu0 0.0
    %541 = vmatpush1.msra.mxu0 0.0
    %542 = vmatprep.subr.mxu0 0.0
    %543 = vmatpush1.msra.mxu0 0.0
    %544 = vmatprep.subr.mxu0 0.0
    %545 = vmatpush1.msra.mxu0 0.0
    %546 = vmatprep.subr.mxu0 0.0
    %547 = vmatpush1.msra.mxu0 0.0
    %548 = vmatprep.subr.mxu0 0.0
    %549 = vmatpush1.msra.mxu0 0.0
    %550 = vmatprep.subr.mxu0 0.0
    %551 = vmatpush1.msra.mxu0 0.0
    %552 = vmatprep.subr.mxu0 0.0
    %553 = vmatpush1.msra.mxu0 0.0
    %554 = vmatprep.mubr.f32.mxu0 0.0
    %555 = vmatmul.mubr.f32.gmra.mrb[0].mxu0 %v488
    %v556 = vpop.f32.mrb[0].mxu0
    %v557 = vadd.f32 0.0, %v556
    %v558 = vpop.f32.mrb[0].mxu0
    %559 = vdwg.mxu0
    %v561 = vsel %vm156, %v318, 0
    %563 = vmatprep.subr.mxu0 0.0
    %564 = vmatpush1.msra.mxu0 %v319
    %565 = vmatprep.subr.mxu0 0.0
    %566 = vmatpush1.msra.mxu0 0.0
    %567 = vmatprep.subr.mxu0 0.0
    %568 = vmatpush1.msra.mxu0 0.0
    %569 = vmatprep.subr.mxu0 0.0
    %570 = vmatpush1.msra.mxu0 0.0
    %571 = vmatprep.subr.mxu0 0.0
    %572 = vmatpush1.msra.mxu0 0.0
    %573 = vmatprep.subr.mxu0 0.0
    %574 = vmatpush1.msra.mxu0 0.0
    %575 = vmatprep.subr.mxu0 0.0
    %576 = vmatpush1.msra.mxu0 0.0
    %577 = vmatprep.subr.mxu0 0.0
    %578 = vmatpush1.msra.mxu0 0.0
    %579 = vmatprep.subr.mxu0 0.0
    %580 = vmatpush1.msra.mxu0 0.0
    %581 = vmatprep.subr.mxu0 0.0
    %582 = vmatpush1.msra.mxu0 0.0
    %583 = vmatprep.subr.mxu0 0.0
    %584 = vmatpush1.msra.mxu0 0.0
    %585 = vmatprep.subr.mxu0 0.0
    %586 = vmatpush1.msra.mxu0 0.0
    %587 = vmatprep.subr.mxu0 0.0
    %588 = vmatpush1.msra.mxu0 0.0
    %589 = vmatprep.subr.mxu0 0.0
    %590 = vmatpush1.msra.mxu0 0.0
    %591 = vmatprep.subr.mxu0 0.0
    %592 = vmatpush1.msra.mxu0 0.0
    %593 = vmatprep.subr.mxu0 0.0
    %594 = vmatpush1.msra.mxu0 0.0
    %595 = vmatprep.subr.mxu0 0.0
    %596 = vmatpush1.msra.mxu0 0.0
    %597 = vmatprep.subr.mxu0 0.0
    %598 = vmatpush1.msra.mxu0 0.0
    %599 = vmatprep.subr.mxu0 0.0
    %600 = vmatpush1.msra.mxu0 0.0
    %601 = vmatprep.subr.mxu0 0.0
    %602 = vmatpush1.msra.mxu0 0.0
    %603 = vmatprep.subr.mxu0 0.0
    %604 = vmatpush1.msra.mxu0 0.0
    %605 = vmatprep.subr.mxu0 0.0
    %606 = vmatpush1.msra.mxu0 0.0
    %607 = vmatprep.subr.mxu0 0.0
    %608 = vmatpush1.msra.mxu0 0.0
    %609 = vmatprep.subr.mxu0 0.0
    %610 = vmatpush1.msra.mxu0 0.0
    %611 = vmatprep.subr.mxu0 0.0
    %612 = vmatpush1.msra.mxu0 0.0
    %613 = vmatprep.subr.mxu0 0.0
    %614 = vmatpush1.msra.mxu0 0.0
    %615 = vmatprep.subr.mxu0 0.0
    %616 = vmatpush1.msra.mxu0 0.0
    %617 = vmatprep.subr.mxu0 0.0
    %618 = vmatpush1.msra.mxu0 0.0
    %619 = vmatprep.subr.mxu0 0.0
    %620 = vmatpush1.msra.mxu0 0.0
    %621 = vmatprep.subr.mxu0 0.0
    %622 = vmatpush1.msra.mxu0 0.0
    %623 = vmatprep.subr.mxu0 0.0
    %624 = vmatpush1.msra.mxu0 0.0
    %625 = vmatprep.subr.mxu0 0.0
    %626 = vmatpush1.msra.mxu0 0.0
    %627 = vmatprep.mubr.f32.mxu0 0.0
    %628 = vmatmul.mubr.f32.gmra.mrb[0].mxu0 %v561
    %v629 = vpop.f32.mrb[0].mxu0
    %v630 = vadd.f32 %v557, %v629
    %v631 = vpop.f32.mrb[0].mxu0
    %632 = vdwg.mxu0
    %633 = vrot.lane.b32.xlu0 %v139, 112
    %v634 = vpop.permute.xlu0 %633
    %635 = vrot.lane.b32.xlu0 %v139, 80
    %v636 = vpop.permute.xlu0 %635
    %v637 = vsel %vm156, %v634, 0
    %v639 = vsel %vm156, %v636, 0
    %641 = vmatprep.subr.mxu0 0.0
    %642 = vmatpush1.xpose.msra.mxu0 %v639
    %643 = vmatprep.subr.mxu0 0.0
    %644 = vmatpush1.xpose.msra.mxu0 0.0
    %645 = vmatprep.subr.mxu0 0.0
    %646 = vmatpush1.xpose.msra.mxu0 0.0
    %647 = vmatprep.subr.mxu0 0.0
    %648 = vmatpush1.xpose.msra.mxu0 0.0
    %649 = vmatprep.subr.mxu0 0.0
    %650 = vmatpush1.xpose.msra.mxu0 0.0
    %651 = vmatprep.subr.mxu0 0.0
    %652 = vmatpush1.xpose.msra.mxu0 0.0
    %653 = vmatprep.subr.mxu0 0.0
    %654 = vmatpush1.xpose.msra.mxu0 0.0
    %655 = vmatprep.subr.mxu0 0.0
    %656 = vmatpush1.xpose.msra.mxu0 0.0
    %657 = vmatprep.subr.mxu0 0.0
    %658 = vmatpush1.xpose.msra.mxu0 0.0
    %659 = vmatprep.subr.mxu0 0.0
    %660 = vmatpush1.xpose.msra.mxu0 0.0
    %661 = vmatprep.subr.mxu0 0.0
    %662 = vmatpush1.xpose.msra.mxu0 0.0
    %663 = vmatprep.subr.mxu0 0.0
    %664 = vmatpush1.xpose.msra.mxu0 0.0
    %665 = vmatprep.subr.mxu0 0.0
    %666 = vmatpush1.xpose.msra.mxu0 0.0
    %667 = vmatprep.subr.mxu0 0.0
    %668 = vmatpush1.xpose.msra.mxu0 0.0
    %669 = vmatprep.subr.mxu0 0.0
    %670 = vmatpush1.xpose.msra.mxu0 0.0
    %671 = vmatprep.subr.mxu0 0.0
    %672 = vmatpush1.xpose.msra.mxu0 0.0
    %673 = vmatprep.subr.mxu0 0.0
    %674 = vmatpush1.xpose.msra.mxu0 0.0
    %675 = vmatprep.subr.mxu0 0.0
    %676 = vmatpush1.xpose.msra.mxu0 0.0
    %677 = vmatprep.subr.mxu0 0.0
    %678 = vmatpush1.xpose.msra.mxu0 0.0
    %679 = vmatprep.subr.mxu0 0.0
    %680 = vmatpush1.xpose.msra.mxu0 0.0
    %681 = vmatprep.subr.mxu0 0.0
    %682 = vmatpush1.xpose.msra.mxu0 0.0
    %683 = vmatprep.subr.mxu0 0.0
    %684 = vmatpush1.xpose.msra.mxu0 0.0
    %685 = vmatprep.subr.mxu0 0.0
    %686 = vmatpush1.xpose.msra.mxu0 0.0
    %687 = vmatprep.subr.mxu0 0.0
    %688 = vmatpush1.xpose.msra.mxu0 0.0
    %689 = vmatprep.subr.mxu0 0.0
    %690 = vmatpush1.xpose.msra.mxu0 0.0
    %691 = vmatprep.subr.mxu0 0.0
    %692 = vmatpush1.xpose.msra.mxu0 0.0
    %693 = vmatprep.subr.mxu0 0.0
    %694 = vmatpush1.xpose.msra.mxu0 0.0
    %695 = vmatprep.subr.mxu0 0.0
    %696 = vmatpush1.xpose.msra.mxu0 0.0
    %697 = vmatprep.subr.mxu0 0.0
    %698 = vmatpush1.xpose.msra.mxu0 0.0
    %699 = vmatprep.subr.mxu0 0.0
    %700 = vmatpush1.xpose.msra.mxu0 0.0
    %701 = vmatprep.subr.mxu0 0.0
    %702 = vmatpush1.xpose.msra.mxu0 0.0
    %703 = vmatprep.subr.mxu0 0.0
    %704 = vmatpush1.xpose.msra.mxu0 0.0
    %705 = vmatprep.mubr.f32.mxu0 0.0
    %706 = vmatmul.mubr.f32.gmra.mrb[0].mxu0 %v637
    %v707 = vpop.f32.mrb[0].mxu0
    %v708 = vadd.f32 0.0, %v707
    %v709 = vpop.f32.mrb[0].mxu0
    %710 = vdwg.mxu0
    %v711 = vsel %vm151, %v708, -1e+30
    %v712 = vsel %vm156, %v711, -inf
    %713 = vmax.xlane.f32.xlu0 %v712
    %v714 = vpop.xlane.xlu0 %713
    %v715 = vsub.f32 %v711, %v714
    %v716 = vmul.f32 %v715, 1.442695
    %v717 = vpow.pop %v716
    %v718 = vsel %vm156, %v717, 0.0
    %719 = vadd.xlane.f32.xlu0 %v718
    %v720 = vpop.xlane.xlu0 %719
    %721 = vrot.lane.b32.xlu0 %v139, 48
    %v722 = vpop.permute.xlu0 %721
    %v725 = vsel %vm156, %v717, 0
    %727 = vmatprep.subr.mxu0 0.0
    %728 = vmatpush1.msra.mxu0 %v722
    %729 = vmatprep.subr.mxu0 0.0
    %730 = vmatpush1.msra.mxu0 0.0
    %731 = vmatprep.subr.mxu0 0.0
    %732 = vmatpush1.msra.mxu0 0.0
    %733 = vmatprep.subr.mxu0 0.0
    %734 = vmatpush1.msra.mxu0 0.0
    %735 = vmatprep.subr.mxu0 0.0
    %736 = vmatpush1.msra.mxu0 0.0
    %737 = vmatprep.subr.mxu0 0.0
    %738 = vmatpush1.msra.mxu0 0.0
    %739 = vmatprep.subr.mxu0 0.0
    %740 = vmatpush1.msra.mxu0 0.0
    %741 = vmatprep.subr.mxu0 0.0
    %742 = vmatpush1.msra.mxu0 0.0
    %743 = vmatprep.subr.mxu0 0.0
    %744 = vmatpush1.msra.mxu0 0.0
    %745 = vmatprep.subr.mxu0 0.0
    %746 = vmatpush1.msra.mxu0 0.0
    %747 = vmatprep.subr.mxu0 0.0
    %748 = vmatpush1.msra.mxu0 0.0
    %749 = vmatprep.subr.mxu0 0.0
    %750 = vmatpush1.msra.mxu0 0.0
    %751 = vmatprep.subr.mxu0 0.0
    %752 = vmatpush1.msra.mxu0 0.0
    %753 = vmatprep.subr.mxu0 0.0
    %754 = vmatpush1.msra.mxu0 0.0
    %755 = vmatprep.subr.mxu0 0.0
    %756 = vmatpush1.msra.mxu0 0.0
    %757 = vmatprep.subr.mxu0 0.0
    %758 = vmatpush1.msra.mxu0 0.0
    %759 = vmatprep.subr.mxu0 0.0
    %760 = vmatpush1.msra.mxu0 0.0
    %761 = vmatprep.subr.mxu0 0.0
    %762 = vmatpush1.msra.mxu0 0.0
    %763 = vmatprep.subr.mxu0 0.0
    %764 = vmatpush1.msra.mxu0 0.0
    %765 = vmatprep.subr.mxu0 0.0
    %766 = vmatpush1.msra.mxu0 0.0
    %767 = vmatprep.subr.mxu0 0.0
    %768 = vmatpush1.msra.mxu0 0.0
    %769 = vmatprep.subr.mxu0 0.0
    %770 = vmatpush1.msra.mxu0 0.0
    %771 = vmatprep.subr.mxu0 0.0
    %772 = vmatpush1.msra.mxu0 0.0
    %773 = vmatprep.subr.mxu0 0.0
    %774 = vmatpush1.msra.mxu0 0.0
    %775 = vmatprep.subr.mxu0 0.0
    %776 = vmatpush1.msra.mxu0 0.0
    %777 = vmatprep.subr.mxu0 0.0
    %778 = vmatpush1.msra.mxu0 0.0
    %779 = vmatprep.subr.mxu0 0.0
    %780 = vmatpush1.msra.mxu0 0.0
    %781 = vmatprep.subr.mxu0 0.0
    %782 = vmatpush1.msra.mxu0 0.0
    %783 = vmatprep.subr.mxu0 0.0
    %784 = vmatpush1.msra.mxu0 0.0
    %785 = vmatprep.subr.mxu0 0.0
    %786 = vmatpush1.msra.mxu0 0.0
    %787 = vmatprep.subr.mxu0 0.0
    %788 = vmatpush1.msra.mxu0 0.0
    %789 = vmatprep.subr.mxu0 0.0
    %790 = vmatpush1.msra.mxu0 0.0
    %791 = vmatprep.mubr.f32.mxu0 0.0
    %792 = vmatmul.mubr.f32.gmra.mrb[0].mxu0 %v725
    %v793 = vpop.f32.mrb[0].mxu0
    %v794 = vadd.f32 0.0, %v793
    %v795 = vpop.f32.mrb[0].mxu0
    %796 = vdwg.mxu0
    %v797 = vrcp.pop %v720
    %v798 = vmul.f32 %v794, %v797
    %v799 = vld [vmem:[#allocation7 + $0x10] sm:$0xff]
    %v801 = vsel %vm156, %v798, 0
    %803 = vmatprep.subr.mxu0 0.0
    %804 = vmatpush1.msra.mxu0 %v799
    %805 = vmatprep.subr.mxu0 0.0
    %806 = vmatpush1.msra.mxu0 0.0
    %807 = vmatprep.subr.mxu0 0.0
    %808 = vmatpush1.msra.mxu0 0.0
    %809 = vmatprep.subr.mxu0 0.0
    %810 = vmatpush1.msra.mxu0 0.0
    %811 = vmatprep.subr.mxu0 0.0
    %812 = vmatpush1.msra.mxu0 0.0
    %813 = vmatprep.subr.mxu0 0.0
    %814 = vmatpush1.msra.mxu0 0.0
    %815 = vmatprep.subr.mxu0 0.0
    %816 = vmatpush1.msra.mxu0 0.0
    %817 = vmatprep.subr.mxu0 0.0
    %818 = vmatpush1.msra.mxu0 0.0
    %819 = vmatprep.subr.mxu0 0.0
    %820 = vmatpush1.msra.mxu0 0.0
    %821 = vmatprep.subr.mxu0 0.0
    %822 = vmatpush1.msra.mxu0 0.0
    %823 = vmatprep.subr.mxu0 0.0
    %824 = vmatpush1.msra.mxu0 0.0
    %825 = vmatprep.subr.mxu0 0.0
    %826 = vmatpush1.msra.mxu0 0.0
    %827 = vmatprep.subr.mxu0 0.0
    %828 = vmatpush1.msra.mxu0 0.0
    %829 = vmatprep.subr.mxu0 0.0
    %830 = vmatpush1.msra.mxu0 0.0
    %831 = vmatprep.subr.mxu0 0.0
    %832 = vmatpush1.msra.mxu0 0.0
    %833 = vmatprep.subr.mxu0 0.0
    %834 = vmatpush1.msra.mxu0 0.0
    %835 = vmatprep.subr.mxu0 0.0
    %836 = vmatpush1.msra.mxu0 0.0
    %837 = vmatprep.subr.mxu0 0.0
    %838 = vmatpush1.msra.mxu0 0.0
    %839 = vmatprep.subr.mxu0 0.0
    %840 = vmatpush1.msra.mxu0 0.0
    %841 = vmatprep.subr.mxu0 0.0
    %842 = vmatpush1.msra.mxu0 0.0
    %843 = vmatprep.subr.mxu0 0.0
    %844 = vmatpush1.msra.mxu0 0.0
    %845 = vmatprep.subr.mxu0 0.0
    %846 = vmatpush1.msra.mxu0 0.0
    %847 = vmatprep.subr.mxu0 0.0
    %848 = vmatpush1.msra.mxu0 0.0
    %849 = vmatprep.subr.mxu0 0.0
    %850 = vmatpush1.msra.mxu0 0.0
    %851 = vmatprep.subr.mxu0 0.0
    %852 = vmatpush1.msra.mxu0 0.0
    %853 = vmatprep.subr.mxu0 0.0
    %854 = vmatpush1.msra.mxu0 0.0
    %855 = vmatprep.subr.mxu0 0.0
    %856 = vmatpush1.msra.mxu0 0.0
    %857 = vmatprep.subr.mxu0 0.0
    %858 = vmatpush1.msra.mxu0 0.0
    %859 = vmatprep.subr.mxu0 0.0
    %860 = vmatpush1.msra.mxu0 0.0
    %861 = vmatprep.subr.mxu0 0.0
    %862 = vmatpush1.msra.mxu0 0.0
    %863 = vmatprep.subr.mxu0 0.0
    %864 = vmatpush1.msra.mxu0 0.0
    %865 = vmatprep.subr.mxu0 0.0
    %866 = vmatpush1.msra.mxu0 0.0
    %867 = vmatprep.mubr.f32.mxu0 0.0
    %868 = vmatmul.mubr.f32.gmra.mrb[0].mxu0 %v801
    %v869 = vpop.f32.mrb[0].mxu0
    %v870 = vadd.f32 0.0, %v869
    %v871 = vpop.f32.mrb[0].mxu0
    %872 = vdwg.mxu0
    %v873 = vadd.f32 %v630, %v870
    %874 = vrot.lane.b32.xlu0 %v139, 104
    %v875 = vpop.permute.xlu0 %874
    %876 = vrot.lane.b32.xlu0 %v139, 72
    %v877 = vpop.permute.xlu0 %876
    %v878 = vsel %vm156, %v875, 0
    %v880 = vsel %vm156, %v877, 0
    %882 = vmatprep.subr.mxu0 0.0
    %883 = vmatpush1.xpose.msra.mxu0 %v880
    %884 = vmatprep.subr.mxu0 0.0
    %885 = vmatpush1.xpose.msra.mxu0 0.0
    %886 = vmatprep.subr.mxu0 0.0
    %887 = vmatpush1.xpose.msra.mxu0 0.0
    %888 = vmatprep.subr.mxu0 0.0
    %889 = vmatpush1.xpose.msra.mxu0 0.0
    %890 = vmatprep.subr.mxu0 0.0
    %891 = vmatpush1.xpose.msra.mxu0 0.0
    %892 = vmatprep.subr.mxu0 0.0
    %893 = vmatpush1.xpose.msra.mxu0 0.0
    %894 = vmatprep.subr.mxu0 0.0
    %895 = vmatpush1.xpose.msra.mxu0 0.0
    %896 = vmatprep.subr.mxu0 0.0
    %897 = vmatpush1.xpose.msra.mxu0 0.0
    %898 = vmatprep.subr.mxu0 0.0
    %899 = vmatpush1.xpose.msra.mxu0 0.0
    %900 = vmatprep.subr.mxu0 0.0
    %901 = vmatpush1.xpose.msra.mxu0 0.0
    %902 = vmatprep.subr.mxu0 0.0
    %903 = vmatpush1.xpose.msra.mxu0 0.0
    %904 = vmatprep.subr.mxu0 0.0
    %905 = vmatpush1.xpose.msra.mxu0 0.0
    %906 = vmatprep.subr.mxu0 0.0
    %907 = vmatpush1.xpose.msra.mxu0 0.0
    %908 = vmatprep.subr.mxu0 0.0
    %909 = vmatpush1.xpose.msra.mxu0 0.0
    %910 = vmatprep.subr.mxu0 0.0
    %911 = vmatpush1.xpose.msra.mxu0 0.0
    %912 = vmatprep.subr.mxu0 0.0
    %913 = vmatpush1.xpose.msra.mxu0 0.0
    %914 = vmatprep.subr.mxu0 0.0
    %915 = vmatpush1.xpose.msra.mxu0 0.0
    %916 = vmatprep.subr.mxu0 0.0
    %917 = vmatpush1.xpose.msra.mxu0 0.0
    %918 = vmatprep.subr.mxu0 0.0
    %919 = vmatpush1.xpose.msra.mxu0 0.0
    %920 = vmatprep.subr.mxu0 0.0
    %921 = vmatpush1.xpose.msra.mxu0 0.0
    %922 = vmatprep.subr.mxu0 0.0
    %923 = vmatpush1.xpose.msra.mxu0 0.0
    %924 = vmatprep.subr.mxu0 0.0
    %925 = vmatpush1.xpose.msra.mxu0 0.0
    %926 = vmatprep.subr.mxu0 0.0
    %927 = vmatpush1.xpose.msra.mxu0 0.0
    %928 = vmatprep.subr.mxu0 0.0
    %929 = vmatpush1.xpose.msra.mxu0 0.0
    %930 = vmatprep.subr.mxu0 0.0
    %931 = vmatpush1.xpose.msra.mxu0 0.0
    %932 = vmatprep.subr.mxu0 0.0
    %933 = vmatpush1.xpose.msra.mxu0 0.0
    %934 = vmatprep.subr.mxu0 0.0
    %935 = vmatpush1.xpose.msra.mxu0 0.0
    %936 = vmatprep.subr.mxu0 0.0
    %937 = vmatpush1.xpose.msra.mxu0 0.0
    %938 = vmatprep.subr.mxu0 0.0
    %939 = vmatpush1.xpose.msra.mxu0 0.0
    %940 = vmatprep.subr.mxu0 0.0
    %941 = vmatpush1.xpose.msra.mxu0 0.0
    %942 = vmatprep.subr.mxu0 0.0
    %943 = vmatpush1.xpose.msra.mxu0 0.0
    %944 = vmatprep.subr.mxu0 0.0
    %945 = vmatpush1.xpose.msra.mxu0 0.0
    %946 = vmatprep.mubr.f32.mxu0 0.0
    %947 = vmatmul.mubr.f32.gmra.mrb[0].mxu0 %v878
    %v948 = vpop.f32.mrb[0].mxu0
    %v949 = vadd.f32 0.0, %v948
    %v950 = vpop.f32.mrb[0].mxu0
    %951 = vdwg.mxu0
    %v952 = vsel %vm151, %v949, -1e+30
    %v953 = vsel %vm156, %v952, -inf
    %954 = vmax.xlane.f32.xlu0 %v953
    %v955 = vpop.xlane.xlu0 %954
    %v956 = vsub.f32 %v952, %v955
    %v957 = vmul.f32 %v956, 1.442695
    %v958 = vpow.pop %v957
    %v959 = vsel %vm156, %v958, 0.0
    %960 = vadd.xlane.f32.xlu0 %v959
    %v961 = vpop.xlane.xlu0 %960
    %962 = vrot.lane.b32.xlu0 %v139, 40
    %v963 = vpop.permute.xlu0 %962
    %v966 = vsel %vm156, %v958, 0
    %968 = vmatprep.subr.mxu0 0.0
    %969 = vmatpush1.msra.mxu0 %v963
    %970 = vmatprep.subr.mxu0 0.0
    %971 = vmatpush1.msra.mxu0 0.0
    %972 = vmatprep.subr.mxu0 0.0
    %973 = vmatpush1.msra.mxu0 0.0
    %974 = vmatprep.subr.mxu0 0.0
    %975 = vmatpush1.msra.mxu0 0.0
    %976 = vmatprep.subr.mxu0 0.0
    %977 = vmatpush1.msra.mxu0 0.0
    %978 = vmatprep.subr.mxu0 0.0
    %979 = vmatpush1.msra.mxu0 0.0
    %980 = vmatprep.subr.mxu0 0.0
    %981 = vmatpush1.msra.mxu0 0.0
    %982 = vmatprep.subr.mxu0 0.0
    %983 = vmatpush1.msra.mxu0 0.0
    %984 = vmatprep.subr.mxu0 0.0
    %985 = vmatpush1.msra.mxu0 0.0
    %986 = vmatprep.subr.mxu0 0.0
    %987 = vmatpush1.msra.mxu0 0.0
    %988 = vmatprep.subr.mxu0 0.0
    %989 = vmatpush1.msra.mxu0 0.0
    %990 = vmatprep.subr.mxu0 0.0
    %991 = vmatpush1.msra.mxu0 0.0
    %992 = vmatprep.subr.mxu0 0.0
    %993 = vmatpush1.msra.mxu0 0.0
    %994 = vmatprep.subr.mxu0 0.0
    %995 = vmatpush1.msra.mxu0 0.0
    %996 = vmatprep.subr.mxu0 0.0
    %997 = vmatpush1.msra.mxu0 0.0
    %998 = vmatprep.subr.mxu0 0.0
    %999 = vmatpush1.msra.mxu0 0.0
    %1000 = vmatprep.subr.mxu0 0.0
    %1001 = vmatpush1.msra.mxu0 0.0
    %1002 = vmatprep.subr.mxu0 0.0
    %1003 = vmatpush1.msra.mxu0 0.0
    %1004 = vmatprep.subr.mxu0 0.0
    %1005 = vmatpush1.msra.mxu0 0.0
    %1006 = vmatprep.subr.mxu0 0.0
    %1007 = vmatpush1.msra.mxu0 0.0
    %1008 = vmatprep.subr.mxu0 0.0
    %1009 = vmatpush1.msra.mxu0 0.0
    %1010 = vmatprep.subr.mxu0 0.0
    %1011 = vmatpush1.msra.mxu0 0.0
    %1012 = vmatprep.subr.mxu0 0.0
    %1013 = vmatpush1.msra.mxu0 0.0
    %1014 = vmatprep.subr.mxu0 0.0
    %1015 = vmatpush1.msra.mxu0 0.0
    %1016 = vmatprep.subr.mxu0 0.0
    %1017 = vmatpush1.msra.mxu0 0.0
    %1018 = vmatprep.subr.mxu0 0.0
    %1019 = vmatpush1.msra.mxu0 0.0
    %1020 = vmatprep.subr.mxu0 0.0
    %1021 = vmatpush1.msra.mxu0 0.0
    %1022 = vmatprep.subr.mxu0 0.0
    %1023 = vmatpush1.msra.mxu0 0.0
    %1024 = vmatprep.subr.mxu0 0.0
    %1025 = vmatpush1.msra.mxu0 0.0
    %1026 = vmatprep.subr.mxu0 0.0
    %1027 = vmatpush1.msra.mxu0 0.0
    %1028 = vmatprep.subr.mxu0 0.0
    %1029 = vmatpush1.msra.mxu0 0.0
    %1030 = vmatprep.subr.mxu0 0.0
    %1031 = vmatpush1.msra.mxu0 0.0
    %1032 = vmatprep.mubr.f32.mxu0 0.0
    %1033 = vmatmul.mubr.f32.gmra.mrb[0].mxu0 %v966
    %v1034 = vpop.f32.mrb[0].mxu0
    %v1035 = vadd.f32 0.0, %v1034
    %v1036 = vpop.f32.mrb[0].mxu0
    %1037 = vdwg.mxu0
    %v1038 = vrcp.pop %v961
    %v1039 = vmul.f32 %v1035, %v1038
    %v1040 = vld [vmem:[#allocation7 + $0x18] sm:$0xff]
    %v1042 = vsel %vm156, %v1039, 0
    %1044 = vmatprep.subr.mxu0 0.0
    %1045 = vmatpush1.msra.mxu0 %v1040
    %1046 = vmatprep.subr.mxu0 0.0
    %1047 = vmatpush1.msra.mxu0 0.0
    %1048 = vmatprep.subr.mxu0 0.0
    %1049 = vmatpush1.msra.mxu0 0.0
    %1050 = vmatprep.subr.mxu0 0.0
    %1051 = vmatpush1.msra.mxu0 0.0
    %1052 = vmatprep.subr.mxu0 0.0
    %1053 = vmatpush1.msra.mxu0 0.0
    %1054 = vmatprep.subr.mxu0 0.0
    %1055 = vmatpush1.msra.mxu0 0.0
    %1056 = vmatprep.subr.mxu0 0.0
    %1057 = vmatpush1.msra.mxu0 0.0
    %1058 = vmatprep.subr.mxu0 0.0
    %1059 = vmatpush1.msra.mxu0 0.0
    %1060 = vmatprep.subr.mxu0 0.0
    %1061 = vmatpush1.msra.mxu0 0.0
    %1062 = vmatprep.subr.mxu0 0.0
    %1063 = vmatpush1.msra.mxu0 0.0
    %1064 = vmatprep.subr.mxu0 0.0
    %1065 = vmatpush1.msra.mxu0 0.0
    %1066 = vmatprep.subr.mxu0 0.0
    %1067 = vmatpush1.msra.mxu0 0.0
    %1068 = vmatprep.subr.mxu0 0.0
    %1069 = vmatpush1.msra.mxu0 0.0
    %1070 = vmatprep.subr.mxu0 0.0
    %1071 = vmatpush1.msra.mxu0 0.0
    %1072 = vmatprep.subr.mxu0 0.0
    %1073 = vmatpush1.msra.mxu0 0.0
    %1074 = vmatprep.subr.mxu0 0.0
    %1075 = vmatpush1.msra.mxu0 0.0
    %1076 = vmatprep.subr.mxu0 0.0
    %1077 = vmatpush1.msra.mxu0 0.0
    %1078 = vmatprep.subr.mxu0 0.0
    %1079 = vmatpush1.msra.mxu0 0.0
    %1080 = vmatprep.subr.mxu0 0.0
    %1081 = vmatpush1.msra.mxu0 0.0
    %1082 = vmatprep.subr.mxu0 0.0
    %1083 = vmatpush1.msra.mxu0 0.0
    %1084 = vmatprep.subr.mxu0 0.0
    %1085 = vmatpush1.msra.mxu0 0.0
    %1086 = vmatprep.subr.mxu0 0.0
    %1087 = vmatpush1.msra.mxu0 0.0
    %1088 = vmatprep.subr.mxu0 0.0
    %1089 = vmatpush1.msra.mxu0 0.0
    %1090 = vmatprep.subr.mxu0 0.0
    %1091 = vmatpush1.msra.mxu0 0.0
    %1092 = vmatprep.subr.mxu0 0.0
    %1093 = vmatpush1.msra.mxu0 0.0
    %1094 = vmatprep.subr.mxu0 0.0
    %1095 = vmatpush1.msra.mxu0 0.0
    %1096 = vmatprep.subr.mxu0 0.0
    %1097 = vmatpush1.msra.mxu0 0.0
    %1098 = vmatprep.subr.mxu0 0.0
    %1099 = vmatpush1.msra.mxu0 0.0
    %1100 = vmatprep.subr.mxu0 0.0
    %1101 = vmatpush1.msra.mxu0 0.0
    %1102 = vmatprep.subr.mxu0 0.0
    %1103 = vmatpush1.msra.mxu0 0.0
    %1104 = vmatprep.subr.mxu0 0.0
    %1105 = vmatpush1.msra.mxu0 0.0
    %1106 = vmatprep.subr.mxu0 0.0
    %1107 = vmatpush1.msra.mxu0 0.0
    %1108 = vmatprep.mubr.f32.mxu0 0.0
    %1109 = vmatmul.mubr.f32.gmra.mrb[0].mxu0 %v1042
    %v1110 = vpop.f32.mrb[0].mxu0
    %v1111 = vadd.f32 0.0, %v1110
    %v1112 = vpop.f32.mrb[0].mxu0
    %1113 = vdwg.mxu0
    %v1114 = vadd.f32 %v873, %v1111
    %v1116 = vlaneseq
    %v1117 = vshrl.u32 %v1116, 7
    %v1118 = vsub.s32 0, %v1117
    %v1119 = vrot.slane %v152, %v1118
    %v1121 = vadd.f32 %v1114, %v1119
    %1122 = vst.msk [vmem:[#allocation8] sm:$0xff] %vm65, %v1121
    %1124 = vrot.lane.b32.xlu0 %v144, 96
    %v1125 = vpop.permute.xlu0 %1124
    %v1126 = vsel %vm156, %v144, 0
    %v1128 = vsel %vm156, %v1125, 0
    %1130 = vmatprep.subr.mxu0 0.0
    %1131 = vmatpush1.xpose.msra.mxu0 %v1128
    %1132 = vmatprep.subr.mxu0 0.0
    %1133 = vmatpush1.xpose.msra.mxu0 0.0
    %1134 = vmatprep.subr.mxu0 0.0
    %1135 = vmatpush1.xpose.msra.mxu0 0.0
    %1136 = vmatprep.subr.mxu0 0.0
    %1137 = vmatpush1.xpose.msra.mxu0 0.0
    %1138 = vmatprep.subr.mxu0 0.0
    %1139 = vmatpush1.xpose.msra.mxu0 0.0
    %1140 = vmatprep.subr.mxu0 0.0
    %1141 = vmatpush1.xpose.msra.mxu0 0.0
    %1142 = vmatprep.subr.mxu0 0.0
    %1143 = vmatpush1.xpose.msra.mxu0 0.0
    %1144 = vmatprep.subr.mxu0 0.0
    %1145 = vmatpush1.xpose.msra.mxu0 0.0
    %1146 = vmatprep.subr.mxu0 0.0
    %1147 = vmatpush1.xpose.msra.mxu0 0.0
    %1148 = vmatprep.subr.mxu0 0.0
    %1149 = vmatpush1.xpose.msra.mxu0 0.0
    %1150 = vmatprep.subr.mxu0 0.0
    %1151 = vmatpush1.xpose.msra.mxu0 0.0
    %1152 = vmatprep.subr.mxu0 0.0
    %1153 = vmatpush1.xpose.msra.mxu0 0.0
    %1154 = vmatprep.subr.mxu0 0.0
    %1155 = vmatpush1.xpose.msra.mxu0 0.0
    %1156 = vmatprep.subr.mxu0 0.0
    %1157 = vmatpush1.xpose.msra.mxu0 0.0
    %1158 = vmatprep.subr.mxu0 0.0
    %1159 = vmatpush1.xpose.msra.mxu0 0.0
    %1160 = vmatprep.subr.mxu0 0.0
    %1161 = vmatpush1.xpose.msra.mxu0 0.0
    %1162 = vmatprep.subr.mxu0 0.0
    %1163 = vmatpush1.xpose.msra.mxu0 0.0
    %1164 = vmatprep.subr.mxu0 0.0
    %1165 = vmatpush1.xpose.msra.mxu0 0.0
    %1166 = vmatprep.subr.mxu0 0.0
    %1167 = vmatpush1.xpose.msra.mxu0 0.0
    %1168 = vmatprep.subr.mxu0 0.0
    %1169 = vmatpush1.xpose.msra.mxu0 0.0
    %1170 = vmatprep.subr.mxu0 0.0
    %1171 = vmatpush1.xpose.msra.mxu0 0.0
    %1172 = vmatprep.subr.mxu0 0.0
    %1173 = vmatpush1.xpose.msra.mxu0 0.0
    %1174 = vmatprep.subr.mxu0 0.0
    %1175 = vmatpush1.xpose.msra.mxu0 0.0
    %1176 = vmatprep.subr.mxu0 0.0
    %1177 = vmatpush1.xpose.msra.mxu0 0.0
    %1178 = vmatprep.subr.mxu0 0.0
    %1179 = vmatpush1.xpose.msra.mxu0 0.0
    %1180 = vmatprep.subr.mxu0 0.0
    %1181 = vmatpush1.xpose.msra.mxu0 0.0
    %1182 = vmatprep.subr.mxu0 0.0
    %1183 = vmatpush1.xpose.msra.mxu0 0.0
    %1184 = vmatprep.subr.mxu0 0.0
    %1185 = vmatpush1.xpose.msra.mxu0 0.0
    %1186 = vmatprep.subr.mxu0 0.0
    %1187 = vmatpush1.xpose.msra.mxu0 0.0
    %1188 = vmatprep.subr.mxu0 0.0
    %1189 = vmatpush1.xpose.msra.mxu0 0.0
    %1190 = vmatprep.subr.mxu0 0.0
    %1191 = vmatpush1.xpose.msra.mxu0 0.0
    %1192 = vmatprep.subr.mxu0 0.0
    %1193 = vmatpush1.xpose.msra.mxu0 0.0
    %1194 = vmatprep.mubr.f32.mxu0 0.0
    %1195 = vmatmul.mubr.f32.gmra.mrb[0].mxu0 %v1126
    %v1196 = vpop.f32.mrb[0].mxu0
    %v1197 = vadd.f32 0.0, %v1196
    %v1198 = vpop.f32.mrb[0].mxu0
    %1199 = vdwg.mxu0
    %v1200 = vsel %vm151, %v1197, -1e+30
    %v1201 = vsel %vm156, %v1200, -inf
    %1202 = vmax.xlane.f32.xlu0 %v1201
    %v1203 = vpop.xlane.xlu0 %1202
    %v1204 = vsub.f32 %v1200, %v1203
    %v1205 = vmul.f32 %v1204, 1.442695
    %v1206 = vpow.pop %v1205
    %v1207 = vsel %vm156, %v1206, 0.0
    %1208 = vadd.xlane.f32.xlu0 %v1207
    %v1209 = vpop.xlane.xlu0 %1208
    %1210 = vrot.lane.b32.xlu0 %v144, 64
    %v1211 = vpop.permute.xlu0 %1210
    %v1214 = vsel %vm156, %v1206, 0
    %1216 = vmatprep.subr.mxu0 0.0
    %1217 = vmatpush1.msra.mxu0 %v1211
    %1218 = vmatprep.subr.mxu0 0.0
    %1219 = vmatpush1.msra.mxu0 0.0
    %1220 = vmatprep.subr.mxu0 0.0
    %1221 = vmatpush1.msra.mxu0 0.0
    %1222 = vmatprep.subr.mxu0 0.0
    %1223 = vmatpush1.msra.mxu0 0.0
    %1224 = vmatprep.subr.mxu0 0.0
    %1225 = vmatpush1.msra.mxu0 0.0
    %1226 = vmatprep.subr.mxu0 0.0
    %1227 = vmatpush1.msra.mxu0 0.0
    %1228 = vmatprep.subr.mxu0 0.0
    %1229 = vmatpush1.msra.mxu0 0.0
    %1230 = vmatprep.subr.mxu0 0.0
    %1231 = vmatpush1.msra.mxu0 0.0
    %1232 = vmatprep.subr.mxu0 0.0
    %1233 = vmatpush1.msra.mxu0 0.0
    %1234 = vmatprep.subr.mxu0 0.0
    %1235 = vmatpush1.msra.mxu0 0.0
    %1236 = vmatprep.subr.mxu0 0.0
    %1237 = vmatpush1.msra.mxu0 0.0
    %1238 = vmatprep.subr.mxu0 0.0
    %1239 = vmatpush1.msra.mxu0 0.0
    %1240 = vmatprep.subr.mxu0 0.0
    %1241 = vmatpush1.msra.mxu0 0.0
    %1242 = vmatprep.subr.mxu0 0.0
    %1243 = vmatpush1.msra.mxu0 0.0
    %1244 = vmatprep.subr.mxu0 0.0
    %1245 = vmatpush1.msra.mxu0 0.0
    %1246 = vmatprep.subr.mxu0 0.0
    %1247 = vmatpush1.msra.mxu0 0.0
    %1248 = vmatprep.subr.mxu0 0.0
    %1249 = vmatpush1.msra.mxu0 0.0
    %1250 = vmatprep.subr.mxu0 0.0
    %1251 = vmatpush1.msra.mxu0 0.0
    %1252 = vmatprep.subr.mxu0 0.0
    %1253 = vmatpush1.msra.mxu0 0.0
    %1254 = vmatprep.subr.mxu0 0.0
    %1255 = vmatpush1.msra.mxu0 0.0
    %1256 = vmatprep.subr.mxu0 0.0
    %1257 = vmatpush1.msra.mxu0 0.0
    %1258 = vmatprep.subr.mxu0 0.0
    %1259 = vmatpush1.msra.mxu0 0.0
    %1260 = vmatprep.subr.mxu0 0.0
    %1261 = vmatpush1.msra.mxu0 0.0
    %1262 = vmatprep.subr.mxu0 0.0
    %1263 = vmatpush1.msra.mxu0 0.0
    %1264 = vmatprep.subr.mxu0 0.0
    %1265 = vmatpush1.msra.mxu0 0.0
    %1266 = vmatprep.subr.mxu0 0.0
    %1267 = vmatpush1.msra.mxu0 0.0
    %1268 = vmatprep.subr.mxu0 0.0
    %1269 = vmatpush1.msra.mxu0 0.0
    %1270 = vmatprep.subr.mxu0 0.0
    %1271 = vmatpush1.msra.mxu0 0.0
    %1272 = vmatprep.subr.mxu0 0.0
    %1273 = vmatpush1.msra.mxu0 0.0
    %1274 = vmatprep.subr.mxu0 0.0
    %1275 = vmatpush1.msra.mxu0 0.0
    %1276 = vmatprep.subr.mxu0 0.0
    %1277 = vmatpush1.msra.mxu0 0.0
    %1278 = vmatprep.subr.mxu0 0.0
    %1279 = vmatpush1.msra.mxu0 0.0
    %1280 = vmatprep.mubr.f32.mxu0 0.0
    %1281 = vmatmul.mubr.f32.gmra.mrb[0].mxu0 %v1214
    %v1282 = vpop.f32.mrb[0].mxu0
    %v1283 = vadd.f32 0.0, %v1282
    %v1284 = vpop.f32.mrb[0].mxu0
    %1285 = vdwg.mxu0
    %v1286 = vrcp.pop %v1209
    %v1287 = vmul.f32 %v1283, %v1286
    %v1288 = vld [vmem:[#allocation7] sm:$0xff]
    %1289 = vrot.lane.b32.xlu0 %v144, 120
    %v1290 = vpop.permute.xlu0 %1289
    %1291 = vrot.lane.b32.xlu0 %v144, 88
    %v1292 = vpop.permute.xlu0 %1291
    %v1293 = vsel %vm156, %v1290, 0
    %v1295 = vsel %vm156, %v1292, 0
    %1297 = vmatprep.subr.mxu0 0.0
    %1298 = vmatpush1.xpose.msra.mxu0 %v1295
    %1299 = vmatprep.subr.mxu0 0.0
    %1300 = vmatpush1.xpose.msra.mxu0 0.0
    %1301 = vmatprep.subr.mxu0 0.0
    %1302 = vmatpush1.xpose.msra.mxu0 0.0
    %1303 = vmatprep.subr.mxu0 0.0
    %1304 = vmatpush1.xpose.msra.mxu0 0.0
    %1305 = vmatprep.subr.mxu0 0.0
    %1306 = vmatpush1.xpose.msra.mxu0 0.0
    %1307 = vmatprep.subr.mxu0 0.0
    %1308 = vmatpush1.xpose.msra.mxu0 0.0
    %1309 = vmatprep.subr.mxu0 0.0
    %1310 = vmatpush1.xpose.msra.mxu0 0.0
    %1311 = vmatprep.subr.mxu0 0.0
    %1312 = vmatpush1.xpose.msra.mxu0 0.0
    %1313 = vmatprep.subr.mxu0 0.0
    %1314 = vmatpush1.xpose.msra.mxu0 0.0
    %1315 = vmatprep.subr.mxu0 0.0
    %1316 = vmatpush1.xpose.msra.mxu0 0.0
    %1317 = vmatprep.subr.mxu0 0.0
    %1318 = vmatpush1.xpose.msra.mxu0 0.0
    %1319 = vmatprep.subr.mxu0 0.0
    %1320 = vmatpush1.xpose.msra.mxu0 0.0
    %1321 = vmatprep.subr.mxu0 0.0
    %1322 = vmatpush1.xpose.msra.mxu0 0.0
    %1323 = vmatprep.subr.mxu0 0.0
    %1324 = vmatpush1.xpose.msra.mxu0 0.0
    %1325 = vmatprep.subr.mxu0 0.0
    %1326 = vmatpush1.xpose.msra.mxu0 0.0
    %1327 = vmatprep.subr.mxu0 0.0
    %1328 = vmatpush1.xpose.msra.mxu0 0.0
    %1329 = vmatprep.subr.mxu0 0.0
    %1330 = vmatpush1.xpose.msra.mxu0 0.0
    %1331 = vmatprep.subr.mxu0 0.0
    %1332 = vmatpush1.xpose.msra.mxu0 0.0
    %1333 = vmatprep.subr.mxu0 0.0
    %1334 = vmatpush1.xpose.msra.mxu0 0.0
    %1335 = vmatprep.subr.mxu0 0.0
    %1336 = vmatpush1.xpose.msra.mxu0 0.0
    %1337 = vmatprep.subr.mxu0 0.0
    %1338 = vmatpush1.xpose.msra.mxu0 0.0
    %1339 = vmatprep.subr.mxu0 0.0
    %1340 = vmatpush1.xpose.msra.mxu0 0.0
    %1341 = vmatprep.subr.mxu0 0.0
    %1342 = vmatpush1.xpose.msra.mxu0 0.0
    %1343 = vmatprep.subr.mxu0 0.0
    %1344 = vmatpush1.xpose.msra.mxu0 0.0
    %1345 = vmatprep.subr.mxu0 0.0
    %1346 = vmatpush1.xpose.msra.mxu0 0.0
    %1347 = vmatprep.subr.mxu0 0.0
    %1348 = vmatpush1.xpose.msra.mxu0 0.0
    %1349 = vmatprep.subr.mxu0 0.0
    %1350 = vmatpush1.xpose.msra.mxu0 0.0
    %1351 = vmatprep.subr.mxu0 0.0
    %1352 = vmatpush1.xpose.msra.mxu0 0.0
    %1353 = vmatprep.subr.mxu0 0.0
    %1354 = vmatpush1.xpose.msra.mxu0 0.0
    %1355 = vmatprep.subr.mxu0 0.0
    %1356 = vmatpush1.xpose.msra.mxu0 0.0
    %1357 = vmatprep.subr.mxu0 0.0
    %1358 = vmatpush1.xpose.msra.mxu0 0.0
    %1359 = vmatprep.subr.mxu0 0.0
    %1360 = vmatpush1.xpose.msra.mxu0 0.0
    %1361 = vmatprep.mubr.f32.mxu0 0.0
    %1362 = vmatmul.mubr.f32.gmra.mrb[0].mxu0 %v1293
    %v1363 = vpop.f32.mrb[0].mxu0
    %v1364 = vadd.f32 0.0, %v1363
    %v1365 = vpop.f32.mrb[0].mxu0
    %1366 = vdwg.mxu0
    %v1367 = vsel %vm151, %v1364, -1e+30
    %v1368 = vsel %vm156, %v1367, -inf
    %1369 = vmax.xlane.f32.xlu0 %v1368
    %v1370 = vpop.xlane.xlu0 %1369
    %v1371 = vsub.f32 %v1367, %v1370
    %v1372 = vmul.f32 %v1371, 1.442695
    %v1373 = vpow.pop %v1372
    %v1374 = vsel %vm156, %v1373, 0.0
    %1375 = vadd.xlane.f32.xlu0 %v1374
    %v1376 = vpop.xlane.xlu0 %1375
    %1377 = vrot.lane.b32.xlu0 %v144, 56
    %v1378 = vpop.permute.xlu0 %1377
    %v1381 = vsel %vm156, %v1373, 0
    %1383 = vmatprep.subr.mxu0 0.0
    %1384 = vmatpush1.msra.mxu0 %v1378
    %1385 = vmatprep.subr.mxu0 0.0
    %1386 = vmatpush1.msra.mxu0 0.0
    %1387 = vmatprep.subr.mxu0 0.0
    %1388 = vmatpush1.msra.mxu0 0.0
    %1389 = vmatprep.subr.mxu0 0.0
    %1390 = vmatpush1.msra.mxu0 0.0
    %1391 = vmatprep.subr.mxu0 0.0
    %1392 = vmatpush1.msra.mxu0 0.0
    %1393 = vmatprep.subr.mxu0 0.0
    %1394 = vmatpush1.msra.mxu0 0.0
    %1395 = vmatprep.subr.mxu0 0.0
    %1396 = vmatpush1.msra.mxu0 0.0
    %1397 = vmatprep.subr.mxu0 0.0
    %1398 = vmatpush1.msra.mxu0 0.0
    %1399 = vmatprep.subr.mxu0 0.0
    %1400 = vmatpush1.msra.mxu0 0.0
    %1401 = vmatprep.subr.mxu0 0.0
    %1402 = vmatpush1.msra.mxu0 0.0
    %1403 = vmatprep.subr.mxu0 0.0
    %1404 = vmatpush1.msra.mxu0 0.0
    %1405 = vmatprep.subr.mxu0 0.0
    %1406 = vmatpush1.msra.mxu0 0.0
    %1407 = vmatprep.subr.mxu0 0.0
    %1408 = vmatpush1.msra.mxu0 0.0
    %1409 = vmatprep.subr.mxu0 0.0
    %1410 = vmatpush1.msra.mxu0 0.0
    %1411 = vmatprep.subr.mxu0 0.0
    %1412 = vmatpush1.msra.mxu0 0.0
    %1413 = vmatprep.subr.mxu0 0.0
    %1414 = vmatpush1.msra.mxu0 0.0
    %1415 = vmatprep.subr.mxu0 0.0
    %1416 = vmatpush1.msra.mxu0 0.0
    %1417 = vmatprep.subr.mxu0 0.0
    %1418 = vmatpush1.msra.mxu0 0.0
    %1419 = vmatprep.subr.mxu0 0.0
    %1420 = vmatpush1.msra.mxu0 0.0
    %1421 = vmatprep.subr.mxu0 0.0
    %1422 = vmatpush1.msra.mxu0 0.0
    %1423 = vmatprep.subr.mxu0 0.0
    %1424 = vmatpush1.msra.mxu0 0.0
    %1425 = vmatprep.subr.mxu0 0.0
    %1426 = vmatpush1.msra.mxu0 0.0
    %1427 = vmatprep.subr.mxu0 0.0
    %1428 = vmatpush1.msra.mxu0 0.0
    %1429 = vmatprep.subr.mxu0 0.0
    %1430 = vmatpush1.msra.mxu0 0.0
    %1431 = vmatprep.subr.mxu0 0.0
    %1432 = vmatpush1.msra.mxu0 0.0
    %1433 = vmatprep.subr.mxu0 0.0
    %1434 = vmatpush1.msra.mxu0 0.0
    %1435 = vmatprep.subr.mxu0 0.0
    %1436 = vmatpush1.msra.mxu0 0.0
    %1437 = vmatprep.subr.mxu0 0.0
    %1438 = vmatpush1.msra.mxu0 0.0
    %1439 = vmatprep.subr.mxu0 0.0
    %1440 = vmatpush1.msra.mxu0 0.0
    %1441 = vmatprep.subr.mxu0 0.0
    %1442 = vmatpush1.msra.mxu0 0.0
    %1443 = vmatprep.subr.mxu0 0.0
    %1444 = vmatpush1.msra.mxu0 0.0
    %1445 = vmatprep.subr.mxu0 0.0
    %1446 = vmatpush1.msra.mxu0 0.0
    %1447 = vmatprep.mubr.f32.mxu0 0.0
    %1448 = vmatmul.mubr.f32.gmra.mrb[0].mxu0 %v1381
    %v1449 = vpop.f32.mrb[0].mxu0
    %v1450 = vadd.f32 0.0, %v1449
    %v1451 = vpop.f32.mrb[0].mxu0
    %1452 = vdwg.mxu0
    %v1453 = vrcp.pop %v1376
    %v1454 = vmul.f32 %v1450, %v1453
    %v1455 = vld [vmem:[#allocation7 + $0x8] sm:$0xff]
    %v1457 = vsel %vm156, %v1454, 0
    %1459 = vmatprep.subr.mxu0 0.0
    %1460 = vmatpush1.msra.mxu0 %v1455
    %1461 = vmatprep.subr.mxu0 0.0
    %1462 = vmatpush1.msra.mxu0 0.0
    %1463 = vmatprep.subr.mxu0 0.0
    %1464 = vmatpush1.msra.mxu0 0.0
    %1465 = vmatprep.subr.mxu0 0.0
    %1466 = vmatpush1.msra.mxu0 0.0
    %1467 = vmatprep.subr.mxu0 0.0
    %1468 = vmatpush1.msra.mxu0 0.0
    %1469 = vmatprep.subr.mxu0 0.0
    %1470 = vmatpush1.msra.mxu0 0.0
    %1471 = vmatprep.subr.mxu0 0.0
    %1472 = vmatpush1.msra.mxu0 0.0
    %1473 = vmatprep.subr.mxu0 0.0
    %1474 = vmatpush1.msra.mxu0 0.0
    %1475 = vmatprep.subr.mxu0 0.0
    %1476 = vmatpush1.msra.mxu0 0.0
    %1477 = vmatprep.subr.mxu0 0.0
    %1478 = vmatpush1.msra.mxu0 0.0
    %1479 = vmatprep.subr.mxu0 0.0
    %1480 = vmatpush1.msra.mxu0 0.0
    %1481 = vmatprep.subr.mxu0 0.0
    %1482 = vmatpush1.msra.mxu0 0.0
    %1483 = vmatprep.subr.mxu0 0.0
    %1484 = vmatpush1.msra.mxu0 0.0
    %1485 = vmatprep.subr.mxu0 0.0
    %1486 = vmatpush1.msra.mxu0 0.0
    %1487 = vmatprep.subr.mxu0 0.0
    %1488 = vmatpush1.msra.mxu0 0.0
    %1489 = vmatprep.subr.mxu0 0.0
    %1490 = vmatpush1.msra.mxu0 0.0
    %1491 = vmatprep.subr.mxu0 0.0
    %1492 = vmatpush1.msra.mxu0 0.0
    %1493 = vmatprep.subr.mxu0 0.0
    %1494 = vmatpush1.msra.mxu0 0.0
    %1495 = vmatprep.subr.mxu0 0.0
    %1496 = vmatpush1.msra.mxu0 0.0
    %1497 = vmatprep.subr.mxu0 0.0
    %1498 = vmatpush1.msra.mxu0 0.0
    %1499 = vmatprep.subr.mxu0 0.0
    %1500 = vmatpush1.msra.mxu0 0.0
    %1501 = vmatprep.subr.mxu0 0.0
    %1502 = vmatpush1.msra.mxu0 0.0
    %1503 = vmatprep.subr.mxu0 0.0
    %1504 = vmatpush1.msra.mxu0 0.0
    %1505 = vmatprep.subr.mxu0 0.0
    %1506 = vmatpush1.msra.mxu0 0.0
    %1507 = vmatprep.subr.mxu0 0.0
    %1508 = vmatpush1.msra.mxu0 0.0
    %1509 = vmatprep.subr.mxu0 0.0
    %1510 = vmatpush1.msra.mxu0 0.0
    %1511 = vmatprep.subr.mxu0 0.0
    %1512 = vmatpush1.msra.mxu0 0.0
    %1513 = vmatprep.subr.mxu0 0.0
    %1514 = vmatpush1.msra.mxu0 0.0
    %1515 = vmatprep.subr.mxu0 0.0
    %1516 = vmatpush1.msra.mxu0 0.0
    %1517 = vmatprep.subr.mxu0 0.0
    %1518 = vmatpush1.msra.mxu0 0.0
    %1519 = vmatprep.subr.mxu0 0.0
    %1520 = vmatpush1.msra.mxu0 0.0
    %1521 = vmatprep.subr.mxu0 0.0
    %1522 = vmatpush1.msra.mxu0 0.0
    %1523 = vmatprep.mubr.f32.mxu0 0.0
    %1524 = vmatmul.mubr.f32.gmra.mrb[0].mxu0 %v1457
    %v1525 = vpop.f32.mrb[0].mxu0
    %v1526 = vadd.f32 0.0, %v1525
    %v1527 = vpop.f32.mrb[0].mxu0
    %1528 = vdwg.mxu0
    %v1530 = vsel %vm156, %v1287, 0
    %1532 = vmatprep.subr.mxu0 0.0
    %1533 = vmatpush1.msra.mxu0 %v1288
    %1534 = vmatprep.subr.mxu0 0.0
    %1535 = vmatpush1.msra.mxu0 0.0
    %1536 = vmatprep.subr.mxu0 0.0
    %1537 = vmatpush1.msra.mxu0 0.0
    %1538 = vmatprep.subr.mxu0 0.0
    %1539 = vmatpush1.msra.mxu0 0.0
    %1540 = vmatprep.subr.mxu0 0.0
    %1541 = vmatpush1.msra.mxu0 0.0
    %1542 = vmatprep.subr.mxu0 0.0
    %1543 = vmatpush1.msra.mxu0 0.0
    %1544 = vmatprep.subr.mxu0 0.0
    %1545 = vmatpush1.msra.mxu0 0.0
    %1546 = vmatprep.subr.mxu0 0.0
    %1547 = vmatpush1.msra.mxu0 0.0
    %1548 = vmatprep.subr.mxu0 0.0
    %1549 = vmatpush1.msra.mxu0 0.0
    %1550 = vmatprep.subr.mxu0 0.0
    %1551 = vmatpush1.msra.mxu0 0.0
    %1552 = vmatprep.subr.mxu0 0.0
    %1553 = vmatpush1.msra.mxu0 0.0
    %1554 = vmatprep.subr.mxu0 0.0
    %1555 = vmatpush1.msra.mxu0 0.0
    %1556 = vmatprep.subr.mxu0 0.0
    %1557 = vmatpush1.msra.mxu0 0.0
    %1558 = vmatprep.subr.mxu0 0.0
    %1559 = vmatpush1.msra.mxu0 0.0
    %1560 = vmatprep.subr.mxu0 0.0
    %1561 = vmatpush1.msra.mxu0 0.0
    %1562 = vmatprep.subr.mxu0 0.0
    %1563 = vmatpush1.msra.mxu0 0.0
    %1564 = vmatprep.subr.mxu0 0.0
    %1565 = vmatpush1.msra.mxu0 0.0
    %1566 = vmatprep.subr.mxu0 0.0
    %1567 = vmatpush1.msra.mxu0 0.0
    %1568 = vmatprep.subr.mxu0 0.0
    %1569 = vmatpush1.msra.mxu0 0.0
    %1570 = vmatprep.subr.mxu0 0.0
    %1571 = vmatpush1.msra.mxu0 0.0
    %1572 = vmatprep.subr.mxu0 0.0
    %1573 = vmatpush1.msra.mxu0 0.0
    %1574 = vmatprep.subr.mxu0 0.0
    %1575 = vmatpush1.msra.mxu0 0.0
    %1576 = vmatprep.subr.mxu0 0.0
    %1577 = vmatpush1.msra.mxu0 0.0
    %1578 = vmatprep.subr.mxu0 0.0
    %1579 = vmatpush1.msra.mxu0 0.0
    %1580 = vmatprep.subr.mxu0 0.0
    %1581 = vmatpush1.msra.mxu0 0.0
    %1582 = vmatprep.subr.mxu0 0.0
    %1583 = vmatpush1.msra.mxu0 0.0
    %1584 = vmatprep.subr.mxu0 0.0
    %1585 = vmatpush1.msra.mxu0 0.0
    %1586 = vmatprep.subr.mxu0 0.0
    %1587 = vmatpush1.msra.mxu0 0.0
    %1588 = vmatprep.subr.mxu0 0.0
    %1589 = vmatpush1.msra.mxu0 0.0
    %1590 = vmatprep.subr.mxu0 0.0
    %1591 = vmatpush1.msra.mxu0 0.0
    %1592 = vmatprep.subr.mxu0 0.0
    %1593 = vmatpush1.msra.mxu0 0.0
    %1594 = vmatprep.subr.mxu0 0.0
    %1595 = vmatpush1.msra.mxu0 0.0
    %1596 = vmatprep.mubr.f32.mxu0 0.0
    %1597 = vmatmul.mubr.f32.gmra.mrb[0].mxu0 %v1530
    %v1598 = vpop.f32.mrb[0].mxu0
    %v1599 = vadd.f32 %v1526, %v1598
    %v1600 = vpop.f32.mrb[0].mxu0
    %1601 = vdwg.mxu0
    %1602 = vrot.lane.b32.xlu0 %v144, 112
    %v1603 = vpop.permute.xlu0 %1602
    %1604 = vrot.lane.b32.xlu0 %v144, 80
    %v1605 = vpop.permute.xlu0 %1604
    %v1606 = vsel %vm156, %v1603, 0
    %v1608 = vsel %vm156, %v1605, 0
    %1610 = vmatprep.subr.mxu0 0.0
    %1611 = vmatpush1.xpose.msra.mxu0 %v1608
    %1612 = vmatprep.subr.mxu0 0.0
    %1613 = vmatpush1.xpose.msra.mxu0 0.0
    %1614 = vmatprep.subr.mxu0 0.0
    %1615 = vmatpush1.xpose.msra.mxu0 0.0
    %1616 = vmatprep.subr.mxu0 0.0
    %1617 = vmatpush1.xpose.msra.mxu0 0.0
    %1618 = vmatprep.subr.mxu0 0.0
    %1619 = vmatpush1.xpose.msra.mxu0 0.0
    %1620 = vmatprep.subr.mxu0 0.0
    %1621 = vmatpush1.xpose.msra.mxu0 0.0
    %1622 = vmatprep.subr.mxu0 0.0
    %1623 = vmatpush1.xpose.msra.mxu0 0.0
    %1624 = vmatprep.subr.mxu0 0.0
    %1625 = vmatpush1.xpose.msra.mxu0 0.0
    %1626 = vmatprep.subr.mxu0 0.0
    %1627 = vmatpush1.xpose.msra.mxu0 0.0
    %1628 = vmatprep.subr.mxu0 0.0
    %1629 = vmatpush1.xpose.msra.mxu0 0.0
    %1630 = vmatprep.subr.mxu0 0.0
    %1631 = vmatpush1.xpose.msra.mxu0 0.0
    %1632 = vmatprep.subr.mxu0 0.0
    %1633 = vmatpush1.xpose.msra.mxu0 0.0
    %1634 = vmatprep.subr.mxu0 0.0
    %1635 = vmatpush1.xpose.msra.mxu0 0.0
    %1636 = vmatprep.subr.mxu0 0.0
    %1637 = vmatpush1.xpose.msra.mxu0 0.0
    %1638 = vmatprep.subr.mxu0 0.0
    %1639 = vmatpush1.xpose.msra.mxu0 0.0
    %1640 = vmatprep.subr.mxu0 0.0
    %1641 = vmatpush1.xpose.msra.mxu0 0.0
    %1642 = vmatprep.subr.mxu0 0.0
    %1643 = vmatpush1.xpose.msra.mxu0 0.0
    %1644 = vmatprep.subr.mxu0 0.0
    %1645 = vmatpush1.xpose.msra.mxu0 0.0
    %1646 = vmatprep.subr.mxu0 0.0
    %1647 = vmatpush1.xpose.msra.mxu0 0.0
    %1648 = vmatprep.subr.mxu0 0.0
    %1649 = vmatpush1.xpose.msra.mxu0 0.0
    %1650 = vmatprep.subr.mxu0 0.0
    %1651 = vmatpush1.xpose.msra.mxu0 0.0
    %1652 = vmatprep.subr.mxu0 0.0
    %1653 = vmatpush1.xpose.msra.mxu0 0.0
    %1654 = vmatprep.subr.mxu0 0.0
    %1655 = vmatpush1.xpose.msra.mxu0 0.0
    %1656 = vmatprep.subr.mxu0 0.0
    %1657 = vmatpush1.xpose.msra.mxu0 0.0
    %1658 = vmatprep.subr.mxu0 0.0
    %1659 = vmatpush1.xpose.msra.mxu0 0.0
    %1660 = vmatprep.subr.mxu0 0.0
    %1661 = vmatpush1.xpose.msra.mxu0 0.0
    %1662 = vmatprep.subr.mxu0 0.0
    %1663 = vmatpush1.xpose.msra.mxu0 0.0
    %1664 = vmatprep.subr.mxu0 0.0
    %1665 = vmatpush1.xpose.msra.mxu0 0.0
    %1666 = vmatprep.subr.mxu0 0.0
    %1667 = vmatpush1.xpose.msra.mxu0 0.0
    %1668 = vmatprep.subr.mxu0 0.0
    %1669 = vmatpush1.xpose.msra.mxu0 0.0
    %1670 = vmatprep.subr.mxu0 0.0
    %1671 = vmatpush1.xpose.msra.mxu0 0.0
    %1672 = vmatprep.subr.mxu0 0.0
    %1673 = vmatpush1.xpose.msra.mxu0 0.0
    %1674 = vmatprep.mubr.f32.mxu0 0.0
    %1675 = vmatmul.mubr.f32.gmra.mrb[0].mxu0 %v1606
    %v1676 = vpop.f32.mrb[0].mxu0
    %v1677 = vadd.f32 0.0, %v1676
    %v1678 = vpop.f32.mrb[0].mxu0
    %1679 = vdwg.mxu0
    %v1680 = vsel %vm151, %v1677, -1e+30
    %v1681 = vsel %vm156, %v1680, -inf
    %1682 = vmax.xlane.f32.xlu0 %v1681
    %v1683 = vpop.xlane.xlu0 %1682
    %v1684 = vsub.f32 %v1680, %v1683
    %v1685 = vmul.f32 %v1684, 1.442695
    %v1686 = vpow.pop %v1685
    %v1687 = vsel %vm156, %v1686, 0.0
    %1688 = vadd.xlane.f32.xlu0 %v1687
    %v1689 = vpop.xlane.xlu0 %1688
    %1690 = vrot.lane.b32.xlu0 %v144, 48
    %v1691 = vpop.permute.xlu0 %1690
    %v1694 = vsel %vm156, %v1686, 0
    %1696 = vmatprep.subr.mxu0 0.0
    %1697 = vmatpush1.msra.mxu0 %v1691
    %1698 = vmatprep.subr.mxu0 0.0
    %1699 = vmatpush1.msra.mxu0 0.0
    %1700 = vmatprep.subr.mxu0 0.0
    %1701 = vmatpush1.msra.mxu0 0.0
    %1702 = vmatprep.subr.mxu0 0.0
    %1703 = vmatpush1.msra.mxu0 0.0
    %1704 = vmatprep.subr.mxu0 0.0
    %1705 = vmatpush1.msra.mxu0 0.0
    %1706 = vmatprep.subr.mxu0 0.0
    %1707 = vmatpush1.msra.mxu0 0.0
    %1708 = vmatprep.subr.mxu0 0.0
    %1709 = vmatpush1.msra.mxu0 0.0
    %1710 = vmatprep.subr.mxu0 0.0
    %1711 = vmatpush1.msra.mxu0 0.0
    %1712 = vmatprep.subr.mxu0 0.0
    %1713 = vmatpush1.msra.mxu0 0.0
    %1714 = vmatprep.subr.mxu0 0.0
    %1715 = vmatpush1.msra.mxu0 0.0
    %1716 = vmatprep.subr.mxu0 0.0
    %1717 = vmatpush1.msra.mxu0 0.0
    %1718 = vmatprep.subr.mxu0 0.0
    %1719 = vmatpush1.msra.mxu0 0.0
    %1720 = vmatprep.subr.mxu0 0.0
    %1721 = vmatpush1.msra.mxu0 0.0
    %1722 = vmatprep.subr.mxu0 0.0
    %1723 = vmatpush1.msra.mxu0 0.0
    %1724 = vmatprep.subr.mxu0 0.0
    %1725 = vmatpush1.msra.mxu0 0.0
    %1726 = vmatprep.subr.mxu0 0.0
    %1727 = vmatpush1.msra.mxu0 0.0
    %1728 = vmatprep.subr.mxu0 0.0
    %1729 = vmatpush1.msra.mxu0 0.0
    %1730 = vmatprep.subr.mxu0 0.0
    %1731 = vmatpush1.msra.mxu0 0.0
    %1732 = vmatprep.subr.mxu0 0.0
    %1733 = vmatpush1.msra.mxu0 0.0
    %1734 = vmatprep.subr.mxu0 0.0
    %1735 = vmatpush1.msra.mxu0 0.0
    %1736 = vmatprep.subr.mxu0 0.0
    %1737 = vmatpush1.msra.mxu0 0.0
    %1738 = vmatprep.subr.mxu0 0.0
    %1739 = vmatpush1.msra.mxu0 0.0
    %1740 = vmatprep.subr.mxu0 0.0
    %1741 = vmatpush1.msra.mxu0 0.0
    %1742 = vmatprep.subr.mxu0 0.0
    %1743 = vmatpush1.msra.mxu0 0.0
    %1744 = vmatprep.subr.mxu0 0.0
    %1745 = vmatpush1.msra.mxu0 0.0
    %1746 = vmatprep.subr.mxu0 0.0
    %1747 = vmatpush1.msra.mxu0 0.0
    %1748 = vmatprep.subr.mxu0 0.0
    %1749 = vmatpush1.msra.mxu0 0.0
    %1750 = vmatprep.subr.mxu0 0.0
    %1751 = vmatpush1.msra.mxu0 0.0
    %1752 = vmatprep.subr.mxu0 0.0
    %1753 = vmatpush1.msra.mxu0 0.0
    %1754 = vmatprep.subr.mxu0 0.0
    %1755 = vmatpush1.msra.mxu0 0.0
    %1756 = vmatprep.subr.mxu0 0.0
    %1757 = vmatpush1.msra.mxu0 0.0
    %1758 = vmatprep.subr.mxu0 0.0
    %1759 = vmatpush1.msra.mxu0 0.0
    %1760 = vmatprep.mubr.f32.mxu0 0.0
    %1761 = vmatmul.mubr.f32.gmra.mrb[0].mxu0 %v1694
    %v1762 = vpop.f32.mrb[0].mxu0
    %v1763 = vadd.f32 0.0, %v1762
    %v1764 = vpop.f32.mrb[0].mxu0
    %1765 = vdwg.mxu0
    %v1766 = vrcp.pop %v1689
    %v1767 = vmul.f32 %v1763, %v1766
    %v1768 = vld [vmem:[#allocation7 + $0x10] sm:$0xff]
    %v1770 = vsel %vm156, %v1767, 0
    %1772 = vmatprep.subr.mxu0 0.0
    %1773 = vmatpush1.msra.mxu0 %v1768
    %1774 = vmatprep.subr.mxu0 0.0
    %1775 = vmatpush1.msra.mxu0 0.0
    %1776 = vmatprep.subr.mxu0 0.0
    %1777 = vmatpush1.msra.mxu0 0.0
    %1778 = vmatprep.subr.mxu0 0.0
    %1779 = vmatpush1.msra.mxu0 0.0
    %1780 = vmatprep.subr.mxu0 0.0
    %1781 = vmatpush1.msra.mxu0 0.0
    %1782 = vmatprep.subr.mxu0 0.0
    %1783 = vmatpush1.msra.mxu0 0.0
    %1784 = vmatprep.subr.mxu0 0.0
    %1785 = vmatpush1.msra.mxu0 0.0
    %1786 = vmatprep.subr.mxu0 0.0
    %1787 = vmatpush1.msra.mxu0 0.0
    %1788 = vmatprep.subr.mxu0 0.0
    %1789 = vmatpush1.msra.mxu0 0.0
    %1790 = vmatprep.subr.mxu0 0.0
    %1791 = vmatpush1.msra.mxu0 0.0
    %1792 = vmatprep.subr.mxu0 0.0
    %1793 = vmatpush1.msra.mxu0 0.0
    %1794 = vmatprep.subr.mxu0 0.0
    %1795 = vmatpush1.msra.mxu0 0.0
    %1796 = vmatprep.subr.mxu0 0.0
    %1797 = vmatpush1.msra.mxu0 0.0
    %1798 = vmatprep.subr.mxu0 0.0
    %1799 = vmatpush1.msra.mxu0 0.0
    %1800 = vmatprep.subr.mxu0 0.0
    %1801 = vmatpush1.msra.mxu0 0.0
    %1802 = vmatprep.subr.mxu0 0.0
    %1803 = vmatpush1.msra.mxu0 0.0
    %1804 = vmatprep.subr.mxu0 0.0
    %1805 = vmatpush1.msra.mxu0 0.0
    %1806 = vmatprep.subr.mxu0 0.0
    %1807 = vmatpush1.msra.mxu0 0.0
    %1808 = vmatprep.subr.mxu0 0.0
    %1809 = vmatpush1.msra.mxu0 0.0
    %1810 = vmatprep.subr.mxu0 0.0
    %1811 = vmatpush1.msra.mxu0 0.0
    %1812 = vmatprep.subr.mxu0 0.0
    %1813 = vmatpush1.msra.mxu0 0.0
    %1814 = vmatprep.subr.mxu0 0.0
    %1815 = vmatpush1.msra.mxu0 0.0
    %1816 = vmatprep.subr.mxu0 0.0
    %1817 = vmatpush1.msra.mxu0 0.0
    %1818 = vmatprep.subr.mxu0 0.0
    %1819 = vmatpush1.msra.mxu0 0.0
    %1820 = vmatprep.subr.mxu0 0.0
    %1821 = vmatpush1.msra.mxu0 0.0
    %1822 = vmatprep.subr.mxu0 0.0
    %1823 = vmatpush1.msra.mxu0 0.0
    %1824 = vmatprep.subr.mxu0 0.0
    %1825 = vmatpush1.msra.mxu0 0.0
    %1826 = vmatprep.subr.mxu0 0.0
    %1827 = vmatpush1.msra.mxu0 0.0
    %1828 = vmatprep.subr.mxu0 0.0
    %1829 = vmatpush1.msra.mxu0 0.0
    %1830 = vmatprep.subr.mxu0 0.0
    %1831 = vmatpush1.msra.mxu0 0.0
    %1832 = vmatprep.subr.mxu0 0.0
    %1833 = vmatpush1.msra.mxu0 0.0
    %1834 = vmatprep.subr.mxu0 0.0
    %1835 = vmatpush1.msra.mxu0 0.0
    %1836 = vmatprep.mubr.f32.mxu0 0.0
    %1837 = vmatmul.mubr.f32.gmra.mrb[0].mxu0 %v1770
    %v1838 = vpop.f32.mrb[0].mxu0
    %v1839 = vadd.f32 0.0, %v1838
    %v1840 = vpop.f32.mrb[0].mxu0
    %1841 = vdwg.mxu0
    %v1842 = vadd.f32 %v1599, %v1839
    %1843 = vrot.lane.b32.xlu0 %v144, 104
    %v1844 = vpop.permute.xlu0 %1843
    %1845 = vrot.lane.b32.xlu0 %v144, 72
    %v1846 = vpop.permute.xlu0 %1845
    %v1847 = vsel %vm156, %v1844, 0
    %v1849 = vsel %vm156, %v1846, 0
    %1851 = vmatprep.subr.mxu0 0.0
    %1852 = vmatpush1.xpose.msra.mxu0 %v1849
    %1853 = vmatprep.subr.mxu0 0.0
    %1854 = vmatpush1.xpose.msra.mxu0 0.0
    %1855 = vmatprep.subr.mxu0 0.0
    %1856 = vmatpush1.xpose.msra.mxu0 0.0
    %1857 = vmatprep.subr.mxu0 0.0
    %1858 = vmatpush1.xpose.msra.mxu0 0.0
    %1859 = vmatprep.subr.mxu0 0.0
    %1860 = vmatpush1.xpose.msra.mxu0 0.0
    %1861 = vmatprep.subr.mxu0 0.0
    %1862 = vmatpush1.xpose.msra.mxu0 0.0
    %1863 = vmatprep.subr.mxu0 0.0
    %1864 = vmatpush1.xpose.msra.mxu0 0.0
    %1865 = vmatprep.subr.mxu0 0.0
    %1866 = vmatpush1.xpose.msra.mxu0 0.0
    %1867 = vmatprep.subr.mxu0 0.0
    %1868 = vmatpush1.xpose.msra.mxu0 0.0
    %1869 = vmatprep.subr.mxu0 0.0
    %1870 = vmatpush1.xpose.msra.mxu0 0.0
    %1871 = vmatprep.subr.mxu0 0.0
    %1872 = vmatpush1.xpose.msra.mxu0 0.0
    %1873 = vmatprep.subr.mxu0 0.0
    %1874 = vmatpush1.xpose.msra.mxu0 0.0
    %1875 = vmatprep.subr.mxu0 0.0
    %1876 = vmatpush1.xpose.msra.mxu0 0.0
    %1877 = vmatprep.subr.mxu0 0.0
    %1878 = vmatpush1.xpose.msra.mxu0 0.0
    %1879 = vmatprep.subr.mxu0 0.0
    %1880 = vmatpush1.xpose.msra.mxu0 0.0
    %1881 = vmatprep.subr.mxu0 0.0
    %1882 = vmatpush1.xpose.msra.mxu0 0.0
    %1883 = vmatprep.subr.mxu0 0.0
    %1884 = vmatpush1.xpose.msra.mxu0 0.0
    %1885 = vmatprep.subr.mxu0 0.0
    %1886 = vmatpush1.xpose.msra.mxu0 0.0
    %1887 = vmatprep.subr.mxu0 0.0
    %1888 = vmatpush1.xpose.msra.mxu0 0.0
    %1889 = vmatprep.subr.mxu0 0.0
    %1890 = vmatpush1.xpose.msra.mxu0 0.0
    %1891 = vmatprep.subr.mxu0 0.0
    %1892 = vmatpush1.xpose.msra.mxu0 0.0
    %1893 = vmatprep.subr.mxu0 0.0
    %1894 = vmatpush1.xpose.msra.mxu0 0.0
    %1895 = vmatprep.subr.mxu0 0.0
    %1896 = vmatpush1.xpose.msra.mxu0 0.0
    %1897 = vmatprep.subr.mxu0 0.0
    %1898 = vmatpush1.xpose.msra.mxu0 0.0
    %1899 = vmatprep.subr.mxu0 0.0
    %1900 = vmatpush1.xpose.msra.mxu0 0.0
    %1901 = vmatprep.subr.mxu0 0.0
    %1902 = vmatpush1.xpose.msra.mxu0 0.0
    %1903 = vmatprep.subr.mxu0 0.0
    %1904 = vmatpush1.xpose.msra.mxu0 0.0
    %1905 = vmatprep.subr.mxu0 0.0
    %1906 = vmatpush1.xpose.msra.mxu0 0.0
    %1907 = vmatprep.subr.mxu0 0.0
    %1908 = vmatpush1.xpose.msra.mxu0 0.0
    %1909 = vmatprep.subr.mxu0 0.0
    %1910 = vmatpush1.xpose.msra.mxu0 0.0
    %1911 = vmatprep.subr.mxu0 0.0
    %1912 = vmatpush1.xpose.msra.mxu0 0.0
    %1913 = vmatprep.subr.mxu0 0.0
    %1914 = vmatpush1.xpose.msra.mxu0 0.0
    %1915 = vmatprep.mubr.f32.mxu0 0.0
    %1916 = vmatmul.mubr.f32.gmra.mrb[0].mxu0 %v1847
    %v1917 = vpop.f32.mrb[0].mxu0
    %v1918 = vadd.f32 0.0, %v1917
    %v1919 = vpop.f32.mrb[0].mxu0
    %1920 = vdwg.mxu0
    %v1921 = vsel %vm151, %v1918, -1e+30
    %v1922 = vsel %vm156, %v1921, -inf
    %1923 = vmax.xlane.f32.xlu0 %v1922
    %v1924 = vpop.xlane.xlu0 %1923
    %v1925 = vsub.f32 %v1921, %v1924
    %v1926 = vmul.f32 %v1925, 1.442695
    %v1927 = vpow.pop %v1926
    %v1928 = vsel %vm156, %v1927, 0.0
    %1929 = vadd.xlane.f32.xlu0 %v1928
    %v1930 = vpop.xlane.xlu0 %1929
    %1931 = vrot.lane.b32.xlu0 %v144, 40
    %v1932 = vpop.permute.xlu0 %1931
    %v1935 = vsel %vm156, %v1927, 0
    %1937 = vmatprep.subr.mxu0 0.0
    %1938 = vmatpush1.msra.mxu0 %v1932
    %1939 = vmatprep.subr.mxu0 0.0
    %1940 = vmatpush1.msra.mxu0 0.0
    %1941 = vmatprep.subr.mxu0 0.0
    %1942 = vmatpush1.msra.mxu0 0.0
    %1943 = vmatprep.subr.mxu0 0.0
    %1944 = vmatpush1.msra.mxu0 0.0
    %1945 = vmatprep.subr.mxu0 0.0
    %1946 = vmatpush1.msra.mxu0 0.0
    %1947 = vmatprep.subr.mxu0 0.0
    %1948 = vmatpush1.msra.mxu0 0.0
    %1949 = vmatprep.subr.mxu0 0.0
    %1950 = vmatpush1.msra.mxu0 0.0
    %1951 = vmatprep.subr.mxu0 0.0
    %1952 = vmatpush1.msra.mxu0 0.0
    %1953 = vmatprep.subr.mxu0 0.0
    %1954 = vmatpush1.msra.mxu0 0.0
    %1955 = vmatprep.subr.mxu0 0.0
    %1956 = vmatpush1.msra.mxu0 0.0
    %1957 = vmatprep.subr.mxu0 0.0
    %1958 = vmatpush1.msra.mxu0 0.0
    %1959 = vmatprep.subr.mxu0 0.0
    %1960 = vmatpush1.msra.mxu0 0.0
    %1961 = vmatprep.subr.mxu0 0.0
    %1962 = vmatpush1.msra.mxu0 0.0
    %1963 = vmatprep.subr.mxu0 0.0
    %1964 = vmatpush1.msra.mxu0 0.0
    %1965 = vmatprep.subr.mxu0 0.0
    %1966 = vmatpush1.msra.mxu0 0.0
    %1967 = vmatprep.subr.mxu0 0.0
    %1968 = vmatpush1.msra.mxu0 0.0
    %1969 = vmatprep.subr.mxu0 0.0
    %1970 = vmatpush1.msra.mxu0 0.0
    %1971 = vmatprep.subr.mxu0 0.0
    %1972 = vmatpush1.msra.mxu0 0.0
    %1973 = vmatprep.subr.mxu0 0.0
    %1974 = vmatpush1.msra.mxu0 0.0
    %1975 = vmatprep.subr.mxu0 0.0
    %1976 = vmatpush1.msra.mxu0 0.0
    %1977 = vmatprep.subr.mxu0 0.0
    %1978 = vmatpush1.msra.mxu0 0.0
    %1979 = vmatprep.subr.mxu0 0.0
    %1980 = vmatpush1.msra.mxu0 0.0
    %1981 = vmatprep.subr.mxu0 0.0
    %1982 = vmatpush1.msra.mxu0 0.0
    %1983 = vmatprep.subr.mxu0 0.0
    %1984 = vmatpush1.msra.mxu0 0.0
    %1985 = vmatprep.subr.mxu0 0.0
    %1986 = vmatpush1.msra.mxu0 0.0
    %1987 = vmatprep.subr.mxu0 0.0
    %1988 = vmatpush1.msra.mxu0 0.0
    %1989 = vmatprep.subr.mxu0 0.0
    %1990 = vmatpush1.msra.mxu0 0.0
    %1991 = vmatprep.subr.mxu0 0.0
    %1992 = vmatpush1.msra.mxu0 0.0
    %1993 = vmatprep.subr.mxu0 0.0
    %1994 = vmatpush1.msra.mxu0 0.0
    %1995 = vmatprep.subr.mxu0 0.0
    %1996 = vmatpush1.msra.mxu0 0.0
    %1997 = vmatprep.subr.mxu0 0.0
    %1998 = vmatpush1.msra.mxu0 0.0
    %1999 = vmatprep.subr.mxu0 0.0
    %2000 = vmatpush1.msra.mxu0 0.0
    %2001 = vmatprep.mubr.f32.mxu0 0.0
    %2002 = vmatmul.mubr.f32.gmra.mrb[0].mxu0 %v1935
    %v2003 = vpop.f32.mrb[0].mxu0
    %v2004 = vadd.f32 0.0, %v2003
    %v2005 = vpop.f32.mrb[0].mxu0
    %2006 = vdwg.mxu0
    %v2007 = vrcp.pop %v1930
    %v2008 = vmul.f32 %v2004, %v2007
    %v2009 = vld [vmem:[#allocation7 + $0x18] sm:$0xff]
    %v2011 = vsel %vm156, %v2008, 0
    %2013 = vmatprep.subr.mxu0 0.0
    %2014 = vmatpush1.msra.mxu0 %v2009
    %2015 = vmatprep.subr.mxu0 0.0
    %2016 = vmatpush1.msra.mxu0 0.0
    %2017 = vmatprep.subr.mxu0 0.0
    %2018 = vmatpush1.msra.mxu0 0.0
    %2019 = vmatprep.subr.mxu0 0.0
    %2020 = vmatpush1.msra.mxu0 0.0
    %2021 = vmatprep.subr.mxu0 0.0
    %2022 = vmatpush1.msra.mxu0 0.0
    %2023 = vmatprep.subr.mxu0 0.0
    %2024 = vmatpush1.msra.mxu0 0.0
    %2025 = vmatprep.subr.mxu0 0.0
    %2026 = vmatpush1.msra.mxu0 0.0
    %2027 = vmatprep.subr.mxu0 0.0
    %2028 = vmatpush1.msra.mxu0 0.0
    %2029 = vmatprep.subr.mxu0 0.0
    %2030 = vmatpush1.msra.mxu0 0.0
    %2031 = vmatprep.subr.mxu0 0.0
    %2032 = vmatpush1.msra.mxu0 0.0
    %2033 = vmatprep.subr.mxu0 0.0
    %2034 = vmatpush1.msra.mxu0 0.0
    %2035 = vmatprep.subr.mxu0 0.0
    %2036 = vmatpush1.msra.mxu0 0.0
    %2037 = vmatprep.subr.mxu0 0.0
    %2038 = vmatpush1.msra.mxu0 0.0
    %2039 = vmatprep.subr.mxu0 0.0
    %2040 = vmatpush1.msra.mxu0 0.0
    %2041 = vmatprep.subr.mxu0 0.0
    %2042 = vmatpush1.msra.mxu0 0.0
    %2043 = vmatprep.subr.mxu0 0.0
    %2044 = vmatpush1.msra.mxu0 0.0
    %2045 = vmatprep.subr.mxu0 0.0
    %2046 = vmatpush1.msra.mxu0 0.0
    %2047 = vmatprep.subr.mxu0 0.0
    %2048 = vmatpush1.msra.mxu0 0.0
    %2049 = vmatprep.subr.mxu0 0.0
    %2050 = vmatpush1.msra.mxu0 0.0
    %2051 = vmatprep.subr.mxu0 0.0
    %2052 = vmatpush1.msra.mxu0 0.0
    %2053 = vmatprep.subr.mxu0 0.0
    %2054 = vmatpush1.msra.mxu0 0.0
    %2055 = vmatprep.subr.mxu0 0.0
    %2056 = vmatpush1.msra.mxu0 0.0
    %2057 = vmatprep.subr.mxu0 0.0
    %2058 = vmatpush1.msra.mxu0 0.0
    %2059 = vmatprep.subr.mxu0 0.0
    %2060 = vmatpush1.msra.mxu0 0.0
    %2061 = vmatprep.subr.mxu0 0.0
    %2062 = vmatpush1.msra.mxu0 0.0
    %2063 = vmatprep.subr.mxu0 0.0
    %2064 = vmatpush1.msra.mxu0 0.0
    %2065 = vmatprep.subr.mxu0 0.0
    %2066 = vmatpush1.msra.mxu0 0.0
    %2067 = vmatprep.subr.mxu0 0.0
    %2068 = vmatpush1.msra.mxu0 0.0
    %2069 = vmatprep.subr.mxu0 0.0
    %2070 = vmatpush1.msra.mxu0 0.0
    %2071 = vmatprep.subr.mxu0 0.0
    %2072 = vmatpush1.msra.mxu0 0.0
    %2073 = vmatprep.subr.mxu0 0.0
    %2074 = vmatpush1.msra.mxu0 0.0
    %2075 = vmatprep.subr.mxu0 0.0
    %2076 = vmatpush1.msra.mxu0 0.0
    %2077 = vmatprep.mubr.f32.mxu0 0.0
    %2078 = vmatmul.mubr.f32.gmra.mrb[0].mxu0 %v2011
    %v2079 = vpop.f32.mrb[0].mxu0
    %v2080 = vadd.f32 0.0, %v2079
    %v2081 = vpop.f32.mrb[0].mxu0
    %2082 = vdwg.mxu0
    %v2083 = vadd.f32 %v1842, %v2080
    %v2084 = vadd.f32 %v2083, %v1119
    %s2085 = scalar_lea.vmem [#allocation8], 8
    %2086 = vst.msk [vmem:[%s2085] sm:$0xff] %vm65, %v2084
    // Predicated region
    $region30: #{tpu_custom_call.1} parent=1 // pred_check
      _
    $region31: #{tpu_custom_call.1} parent=1 // pred_check_branch
      %2088 = sbr.rel (0) target = $region33
    $region32: #{tpu_custom_call.1} parent=1 // pred_region
      %s2090 = ssub.s32 256, 256
      %2091 = vsyncadd [#allocation4], %s2090
      %s2092 = sshll.u32 [#allocation8], 4
      %s2093 = int_to_ptr.vmem [resolvable:$true] %s2092
      %2098 = dma.vmem_to_hbm [thread:$0]  %s2093, 256, %s4, [#allocation4], 128, 128, 8
    $region33: #{tpu_custom_call.1} parent=1 // pred_fallthru
      _
    // Predicated region
    $region34: #{tpu_custom_call.1} parent=1 // pred_check
      _
    $region35: #{tpu_custom_call.1} parent=1 // pred_check_branch
      %2100 = sbr.rel (0) target = $region37
    $region36: #{tpu_custom_call.1} parent=1 // pred_region
      %2101 = dma.done [#allocation4], 256
    $region37: #{tpu_custom_call.1} parent=1 // pred_fallthru
      _
    %2102 = vsyncpa [#allocation3], 1
    %2103 = vsyncpa [#allocation6], 1
    %2104 = vsyncpa [#allocation4], 1

</llo_original>
